<compile_context>
chip_gen: v7x
topology: tpu7x:2x2x1
jax: 0.10.0
libtpu: 0.0.40
codegen_flags: <defaults>
</compile_context>

<pallas_src>
import jax
import jax.numpy as jnp
from jax.experimental import pallas as pl
from jax.experimental.pallas import tpu as pltpu

INPUT_SIZE = 19
HIDDEN_SIZE = 8
LANE_TILE = 128  # batch tile size on the lane axis


def lstm_fc_sigmoid_kernel(x_ref, w_ih_ref, w_hh_ref, b_ref, w_fc_ref, b_fc_ref, out_ref):
    """LSTM recurrence + Linear(H,1) + Sigmoid for one batch tile.

    Batch lives on the lane axis (lane-dense DMA and lane-dense output stores).

    x_ref    : (T, D, TB)  time-major input; features on sublanes, batch on lanes
    w_ih_ref : (4H, D)     weight_ih_l0, gate rows permuted to [i, f, o, g]
    w_hh_ref : (4H, H)     weight_hh_l0, gate rows permuted to [i, f, o, g]
    b_ref    : (4H, 1)     bias_ih_l0 + bias_hh_l0 (same permutation)
    w_fc_ref : (H, 1)      fc.weight.T
    b_fc_ref : (1, 1)      fc.bias
    out_ref  : (1, TB)     sigmoid(fc(h_T)); wrapper slices/reshapes to (B, 1)
    """
    T, D, TB = x_ref.shape
    G, H = w_hh_ref.shape  # G = 4H

    # Loop-invariant VMEM loads hoisted once.
    w_ih = w_ih_ref[...]          # (4H, D)
    w_hh = w_hh_ref[...]          # (4H, H)
    b = b_ref[...]                # (4H, 1)

    h = jnp.zeros((H, TB), jnp.float32)
    c = jnp.zeros((H, TB), jnp.float32)

    # Fully unrolled recurrence (T is small and static).  The per-step input
    # projection w_ih @ x_t is independent of h/c, so the scheduler can push it
    # to the MXU ahead of the serial chain; the recurrent w_hh @ h is one MXU
    # push/pop per step.
    for t in range(T):
        gates = jnp.dot(w_ih, x_ref[t], preferred_element_type=jnp.float32) + b
        if t > 0:
            gates = gates + jnp.dot(w_hh, h, preferred_element_type=jnp.float32)

        # Gate rows are [i, f, o, g]: one sigmoid over a contiguous (3H, TB)
        # slice and one tanh over (H, TB).  H = 8, so all slices are
        # sublane-tile aligned.
        ifo = jax.nn.sigmoid(gates[0:3 * H, :])
        g = jnp.tanh(gates[3 * H:4 * H, :])
        i = ifo[0:H, :]
        f = ifo[H:2 * H, :]
        o = ifo[2 * H:3 * H, :]

        c = f * c + i * g
        h = o * jnp.tanh(c)

    # Final Linear(H, 1) + Sigmoid: VPU multiply + sublane (XLU) reduction,
    # avoiding a degenerate 1-lane MXU matmul.
    logits = jnp.sum(h * w_fc_ref[...], axis=0, keepdims=True) + b_fc_ref[...]  # (1, TB)
    out_ref[...] = jax.nn.sigmoid(logits)


@jax.jit
def lstm_model_forward(x, params):
    """x: (B, T, D) float32 (batch_first, like the PyTorch module). Returns (B, 1)."""
    w_ih, w_hh, b_ih, b_hh, w_fc, b_fc = params
    B, T, D = x.shape
    G, H = w_hh.shape  # (4H, H)

    # Batch on the lane axis, tiled in chunks of 128 lanes:
    #  - every block satisfies the (8,128) lane constraint,
    #  - B > 128 gives grid > 1 so v7x's two TensorCores both get work,
    #  - large batches never become a single spilling mega-tile.
    TB = LANE_TILE
    B_pad = max(TB, ((B + TB - 1) // TB) * TB)
    grid = (B_pad // TB,)

    # Single relayout: (B, T, D) -> (T, D, B_pad).  Putting batch on lanes makes
    # the x DMA lane-dense and removes the implicit pre-MXU transpose of x.
    # Under jit the transpose + pad fuse into the same relayout pass.
    x_tdb = jnp.transpose(x.astype(jnp.float32), (1, 2, 0))
    if B_pad != B:
        x_tdb = jnp.pad(x_tdb, ((0, 0), (0, 0), (0, B_pad - B)))

    # One-time host-side gate-row permutation: PyTorch [i, f, g, o] -> [i, f, o, g]
    # so the kernel issues one sigmoid (3H rows) + one tanh (H rows) per step.
    perm = jnp.concatenate([
        jnp.arange(0 * H, 1 * H), jnp.arange(1 * H, 2 * H),
        jnp.arange(3 * H, 4 * H), jnp.arange(2 * H, 3 * H),
    ])
    w_ih_g = w_ih.astype(jnp.float32)[perm]                        # (4H, D)
    w_hh_g = w_hh.astype(jnp.float32)[perm]                        # (4H, H)
    b_g = (b_ih + b_hh).astype(jnp.float32)[perm].reshape(G, 1)    # (4H, 1)
    w_fc_c = w_fc.reshape(H, 1).astype(jnp.float32)                # (H, 1) == fc.weight.T
    b_fc_2 = b_fc.reshape(1, 1).astype(jnp.float32)                # (1, 1)

    out = pl.pallas_call(
        lstm_fc_sigmoid_kernel,
        out_shape=jax.ShapeDtypeStruct((1, B_pad), jnp.float32),
        grid=grid,
        in_specs=[
            pl.BlockSpec((T, D, TB), lambda i: (0, 0, i)),   # x tile (batch on lanes)
            pl.BlockSpec((G, D), lambda i: (0, 0)),          # w_ih (permuted)
            pl.BlockSpec((G, H), lambda i: (0, 0)),          # w_hh (permuted)
            pl.BlockSpec((G, 1), lambda i: (0, 0)),          # combined bias
            pl.BlockSpec((H, 1), lambda i: (0, 0)),          # fc weight
            pl.BlockSpec((1, 1), lambda i: (0, 0)),          # fc bias
        ],
        out_specs=pl.BlockSpec((1, TB), lambda i: (0, i)),
        compiler_params=pltpu.CompilerParams(
            dimension_semantics=("parallel",)),
    )(x_tdb, w_ih_g, w_hh_g, b_g, w_fc_c, b_fc_2)

    return out[0, :B].reshape(B, 1)


def init_params(key, input_size=INPUT_SIZE, hidden_size=HIDDEN_SIZE):
    """Deterministic init mirroring PyTorch's uniform(-1/sqrt(H), 1/sqrt(H))."""
    H, D = hidden_size, input_size
    bound = 1.0 / jnp.sqrt(jnp.float32(H))
    ks = jax.random.split(key, 6)
    w_ih = jax.random.uniform(ks[0], (4 * H, D), jnp.float32, -bound, bound)
    w_hh = jax.random.uniform(ks[1], (4 * H, H), jnp.float32, -bound, bound)
    b_ih = jax.random.uniform(ks[2], (4 * H,), jnp.float32, -bound, bound)
    b_hh = jax.random.uniform(ks[3], (4 * H,), jnp.float32, -bound, bound)
    w_fc = jax.random.uniform(ks[4], (1, H), jnp.float32, -bound, bound)
    b_fc = jax.random.uniform(ks[5], (1,), jnp.float32, -bound, bound)
    return (w_ih, w_hh, b_ih, b_hh, w_fc, b_fc)


def reference_forward(x, params):
    """Pure-JAX reference matching PyTorch LSTM -> fc -> sigmoid semantics."""
    w_ih, w_hh, b_ih, b_hh, w_fc, b_fc = params
    B, T, D = x.shape
    H = w_hh.shape[1]
    h = jnp.zeros((B, H), jnp.float32)
    c = jnp.zeros((B, H), jnp.float32)
    for t in range(T):
        gates = x[:, t, :] @ w_ih.T + b_ih + h @ w_hh.T + b_hh
        i = jax.nn.sigmoid(gates[:, 0:H])
        f = jax.nn.sigmoid(gates[:, H:2 * H])
        g = jnp.tanh(gates[:, 2 * H:3 * H])
        o = jax.nn.sigmoid(gates[:, 3 * H:4 * H])
        c = f * c + i * g
        h = o * jnp.tanh(c)
    return jax.nn.sigmoid(h @ w_fc.T + b_fc)


# TODO(synk): fit/predict/predictall (Adam optimizer, BCELoss, training loop) are
# training-time utilities with no forward-pass Pallas equivalent; only forward()
# is implemented.

if __name__ == "__main__":
    key = jax.random.PRNGKey(0)
    k_x, k_p = jax.random.split(key)

    B, T, D = 4, 8, INPUT_SIZE
    x = jax.random.normal(k_x, (B, T, D), jnp.float32)
    params = init_params(k_p)

    out = lstm_model_forward(x, params)
    out = jax.block_until_ready(out)

    ref = reference_forward(x, params)
    assert out.shape == (B, 1)
    assert jnp.allclose(out, ref, atol=1e-5, rtol=1e-5), (out, ref)

    print("KERNEL_OK")
</pallas_src>

<mosaic_0001>
module attributes {stable_mosaic.version = 11 : i64} {
  func.func @lstm_fc_sigmoid_kernel(%arg0: i32, %arg1: memref<8x19x128xf32, #tpu.memory_space<vmem>>, %arg2: memref<32x19xf32, #tpu.memory_space<vmem>>, %arg3: memref<32x8xf32, #tpu.memory_space<vmem>>, %arg4: memref<32x1xf32, #tpu.memory_space<vmem>>, %arg5: memref<8x1xf32, #tpu.memory_space<vmem>>, %arg6: memref<1x1xf32, #tpu.memory_space<vmem>>, %arg7: memref<1x128xf32, #tpu.memory_space<vmem>>) attributes {dimension_semantics = [#tpu.dimension_semantics<parallel>], iteration_bounds = array<i64: 1>, scalar_prefetch = 0 : i64, scratch_operands = 0 : i64, tpu.core_type = #tpu.core_type<tc>, window_params = [{transform_indices = @transform_0, window_bounds = array<i64: 8, 19, 128>}, {pipeline_mode = #tpu.pipeline_mode<synchronous>, transform_indices = @transform_1, window_bounds = array<i64: 32, 19>}, {pipeline_mode = #tpu.pipeline_mode<synchronous>, transform_indices = @transform_2, window_bounds = array<i64: 32, 8>}, {pipeline_mode = #tpu.pipeline_mode<synchronous>, transform_indices = @transform_3, window_bounds = array<i64: 32, 1>}, {pipeline_mode = #tpu.pipeline_mode<synchronous>, transform_indices = @transform_4, window_bounds = array<i64: 8, 1>}, {pipeline_mode = #tpu.pipeline_mode<synchronous>, transform_indices = @transform_5, window_bounds = array<i64: 1, 1>}, {transform_indices = @transform_6, window_bounds = array<i64: 1, 128>}]} {
    %c0 = arith.constant 0 : index
    %c0_0 = arith.constant 0 : index
    %0 = vector.load %arg2[%c0, %c0_0] : memref<32x19xf32, #tpu.memory_space<vmem>>, vector<32x19xf32>
    %c0_1 = arith.constant 0 : index
    %c0_2 = arith.constant 0 : index
    %1 = vector.load %arg3[%c0_1, %c0_2] : memref<32x8xf32, #tpu.memory_space<vmem>>, vector<32x8xf32>
    %c0_3 = arith.constant 0 : index
    %c0_4 = arith.constant 0 : index
    %2 = vector.load %arg4[%c0_3, %c0_4] : memref<32x1xf32, #tpu.memory_space<vmem>>, vector<32x1xf32>
    %cst = arith.constant 0.000000e+00 : f32
    %3 = vector.broadcast %cst : f32 to vector<8x128xf32>
    %c0_5 = arith.constant 0 : index
    %c0_6 = arith.constant 0 : index
    %c0_7 = arith.constant 0 : index
    %4 = vector.load %arg1[%c0_5, %c0_6, %c0_7] : memref<8x19x128xf32, #tpu.memory_space<vmem>>, vector<1x19x128xf32>
    %5 = vector.shape_cast %4 : vector<1x19x128xf32> to vector<19x128xf32>
    %cst_8 = arith.constant dense<0.000000e+00> : vector<32x128xf32>
    %6 = tpu.matmul %0, %5, %cst_8 {dimension_numbers = #tpu.dot_dimension_numbers<[1], [0], [0], [1], [0, 0, 1, 1], [], []>} : vector<32x19xf32>, vector<19x128xf32>, vector<32x128xf32> -> vector<32x128xf32>
    %7 = vector.broadcast %2 : vector<32x1xf32> to vector<32x128xf32>
    %8 = arith.addf %6, %7 : vector<32x128xf32>
    %9 = vector.extract_strided_slice %8 {offsets = [0, 0], sizes = [24, 128], strides = [1, 1]} : vector<32x128xf32> to vector<24x128xf32>
    %10 = arith.negf %9 : vector<24x128xf32>
    %11 = math.exp %10 : vector<24x128xf32>
    %cst_9 = arith.constant 1.000000e+00 : f32
    %12 = vector.broadcast %cst_9 : f32 to vector<24x128xf32>
    %13 = arith.addf %12, %11 : vector<24x128xf32>
    %14 = arith.divf %12, %13 : vector<24x128xf32>
    %15 = vector.extract_strided_slice %8 {offsets = [24, 0], sizes = [8, 128], strides = [1, 1]} : vector<32x128xf32> to vector<8x128xf32>
    %16 = math.tanh %15 : vector<8x128xf32>
    %17 = vector.extract_strided_slice %14 {offsets = [0, 0], sizes = [8, 128], strides = [1, 1]} : vector<24x128xf32> to vector<8x128xf32>
    %18 = vector.extract_strided_slice %14 {offsets = [8, 0], sizes = [8, 128], strides = [1, 1]} : vector<24x128xf32> to vector<8x128xf32>
    %19 = vector.extract_strided_slice %14 {offsets = [16, 0], sizes = [8, 128], strides = [1, 1]} : vector<24x128xf32> to vector<8x128xf32>
    %20 = arith.mulf %18, %3 : vector<8x128xf32>
    %21 = arith.mulf %17, %16 : vector<8x128xf32>
    %22 = arith.addf %20, %21 : vector<8x128xf32>
    %23 = math.tanh %22 : vector<8x128xf32>
    %24 = arith.mulf %19, %23 : vector<8x128xf32>
    %c1 = arith.constant 1 : index
    %c0_10 = arith.constant 0 : index
    %c0_11 = arith.constant 0 : index
    %25 = vector.load %arg1[%c1, %c0_10, %c0_11] : memref<8x19x128xf32, #tpu.memory_space<vmem>>, vector<1x19x128xf32>
    %26 = vector.shape_cast %25 : vector<1x19x128xf32> to vector<19x128xf32>
    %cst_12 = arith.constant dense<0.000000e+00> : vector<32x128xf32>
    %27 = tpu.matmul %0, %26, %cst_12 {dimension_numbers = #tpu.dot_dimension_numbers<[1], [0], [0], [1], [0, 0, 1, 1], [], []>} : vector<32x19xf32>, vector<19x128xf32>, vector<32x128xf32> -> vector<32x128xf32>
    %28 = vector.broadcast %2 : vector<32x1xf32> to vector<32x128xf32>
    %29 = arith.addf %27, %28 : vector<32x128xf32>
    %cst_13 = arith.constant dense<0.000000e+00> : vector<32x128xf32>
    %30 = tpu.matmul %1, %24, %cst_13 {dimension_numbers = #tpu.dot_dimension_numbers<[1], [0], [0], [1], [0, 0, 1, 1], [], []>} : vector<32x8xf32>, vector<8x128xf32>, vector<32x128xf32> -> vector<32x128xf32>
    %31 = arith.addf %29, %30 : vector<32x128xf32>
    %32 = vector.extract_strided_slice %31 {offsets = [0, 0], sizes = [24, 128], strides = [1, 1]} : vector<32x128xf32> to vector<24x128xf32>
    %33 = arith.negf %32 : vector<24x128xf32>
    %34 = math.exp %33 : vector<24x128xf32>
    %cst_14 = arith.constant 1.000000e+00 : f32
    %35 = vector.broadcast %cst_14 : f32 to vector<24x128xf32>
    %36 = arith.addf %35, %34 : vector<24x128xf32>
    %37 = arith.divf %35, %36 : vector<24x128xf32>
    %38 = vector.extract_strided_slice %31 {offsets = [24, 0], sizes = [8, 128], strides = [1, 1]} : vector<32x128xf32> to vector<8x128xf32>
    %39 = math.tanh %38 : vector<8x128xf32>
    %40 = vector.extract_strided_slice %37 {offsets = [0, 0], sizes = [8, 128], strides = [1, 1]} : vector<24x128xf32> to vector<8x128xf32>
    %41 = vector.extract_strided_slice %37 {offsets = [8, 0], sizes = [8, 128], strides = [1, 1]} : vector<24x128xf32> to vector<8x128xf32>
    %42 = vector.extract_strided_slice %37 {offsets = [16, 0], sizes = [8, 128], strides = [1, 1]} : vector<24x128xf32> to vector<8x128xf32>
    %43 = arith.mulf %41, %22 : vector<8x128xf32>
    %44 = arith.mulf %40, %39 : vector<8x128xf32>
    %45 = arith.addf %43, %44 : vector<8x128xf32>
    %46 = math.tanh %45 : vector<8x128xf32>
    %47 = arith.mulf %42, %46 : vector<8x128xf32>
    %c2 = arith.constant 2 : index
    %c0_15 = arith.constant 0 : index
    %c0_16 = arith.constant 0 : index
    %48 = vector.load %arg1[%c2, %c0_15, %c0_16] : memref<8x19x128xf32, #tpu.memory_space<vmem>>, vector<1x19x128xf32>
    %49 = vector.shape_cast %48 : vector<1x19x128xf32> to vector<19x128xf32>
    %cst_17 = arith.constant dense<0.000000e+00> : vector<32x128xf32>
    %50 = tpu.matmul %0, %49, %cst_17 {dimension_numbers = #tpu.dot_dimension_numbers<[1], [0], [0], [1], [0, 0, 1, 1], [], []>} : vector<32x19xf32>, vector<19x128xf32>, vector<32x128xf32> -> vector<32x128xf32>
    %51 = vector.broadcast %2 : vector<32x1xf32> to vector<32x128xf32>
    %52 = arith.addf %50, %51 : vector<32x128xf32>
    %cst_18 = arith.constant dense<0.000000e+00> : vector<32x128xf32>
    %53 = tpu.matmul %1, %47, %cst_18 {dimension_numbers = #tpu.dot_dimension_numbers<[1], [0], [0], [1], [0, 0, 1, 1], [], []>} : vector<32x8xf32>, vector<8x128xf32>, vector<32x128xf32> -> vector<32x128xf32>
    %54 = arith.addf %52, %53 : vector<32x128xf32>
    %55 = vector.extract_strided_slice %54 {offsets = [0, 0], sizes = [24, 128], strides = [1, 1]} : vector<32x128xf32> to vector<24x128xf32>
    %56 = arith.negf %55 : vector<24x128xf32>
    %57 = math.exp %56 : vector<24x128xf32>
    %cst_19 = arith.constant 1.000000e+00 : f32
    %58 = vector.broadcast %cst_19 : f32 to vector<24x128xf32>
    %59 = arith.addf %58, %57 : vector<24x128xf32>
    %60 = arith.divf %58, %59 : vector<24x128xf32>
    %61 = vector.extract_strided_slice %54 {offsets = [24, 0], sizes = [8, 128], strides = [1, 1]} : vector<32x128xf32> to vector<8x128xf32>
    %62 = math.tanh %61 : vector<8x128xf32>
    %63 = vector.extract_strided_slice %60 {offsets = [0, 0], sizes = [8, 128], strides = [1, 1]} : vector<24x128xf32> to vector<8x128xf32>
    %64 = vector.extract_strided_slice %60 {offsets = [8, 0], sizes = [8, 128], strides = [1, 1]} : vector<24x128xf32> to vector<8x128xf32>
    %65 = vector.extract_strided_slice %60 {offsets = [16, 0], sizes = [8, 128], strides = [1, 1]} : vector<24x128xf32> to vector<8x128xf32>
    %66 = arith.mulf %64, %45 : vector<8x128xf32>
    %67 = arith.mulf %63, %62 : vector<8x128xf32>
    %68 = arith.addf %66, %67 : vector<8x128xf32>
    %69 = math.tanh %68 : vector<8x128xf32>
    %70 = arith.mulf %65, %69 : vector<8x128xf32>
    %c3 = arith.constant 3 : index
    %c0_20 = arith.constant 0 : index
    %c0_21 = arith.constant 0 : index
    %71 = vector.load %arg1[%c3, %c0_20, %c0_21] : memref<8x19x128xf32, #tpu.memory_space<vmem>>, vector<1x19x128xf32>
    %72 = vector.shape_cast %71 : vector<1x19x128xf32> to vector<19x128xf32>
    %cst_22 = arith.constant dense<0.000000e+00> : vector<32x128xf32>
    %73 = tpu.matmul %0, %72, %cst_22 {dimension_numbers = #tpu.dot_dimension_numbers<[1], [0], [0], [1], [0, 0, 1, 1], [], []>} : vector<32x19xf32>, vector<19x128xf32>, vector<32x128xf32> -> vector<32x128xf32>
    %74 = vector.broadcast %2 : vector<32x1xf32> to vector<32x128xf32>
    %75 = arith.addf %73, %74 : vector<32x128xf32>
    %cst_23 = arith.constant dense<0.000000e+00> : vector<32x128xf32>
    %76 = tpu.matmul %1, %70, %cst_23 {dimension_numbers = #tpu.dot_dimension_numbers<[1], [0], [0], [1], [0, 0, 1, 1], [], []>} : vector<32x8xf32>, vector<8x128xf32>, vector<32x128xf32> -> vector<32x128xf32>
    %77 = arith.addf %75, %76 : vector<32x128xf32>
    %78 = vector.extract_strided_slice %77 {offsets = [0, 0], sizes = [24, 128], strides = [1, 1]} : vector<32x128xf32> to vector<24x128xf32>
    %79 = arith.negf %78 : vector<24x128xf32>
    %80 = math.exp %79 : vector<24x128xf32>
    %cst_24 = arith.constant 1.000000e+00 : f32
    %81 = vector.broadcast %cst_24 : f32 to vector<24x128xf32>
    %82 = arith.addf %81, %80 : vector<24x128xf32>
    %83 = arith.divf %81, %82 : vector<24x128xf32>
    %84 = vector.extract_strided_slice %77 {offsets = [24, 0], sizes = [8, 128], strides = [1, 1]} : vector<32x128xf32> to vector<8x128xf32>
    %85 = math.tanh %84 : vector<8x128xf32>
    %86 = vector.extract_strided_slice %83 {offsets = [0, 0], sizes = [8, 128], strides = [1, 1]} : vector<24x128xf32> to vector<8x128xf32>
    %87 = vector.extract_strided_slice %83 {offsets = [8, 0], sizes = [8, 128], strides = [1, 1]} : vector<24x128xf32> to vector<8x128xf32>
    %88 = vector.extract_strided_slice %83 {offsets = [16, 0], sizes = [8, 128], strides = [1, 1]} : vector<24x128xf32> to vector<8x128xf32>
    %89 = arith.mulf %87, %68 : vector<8x128xf32>
    %90 = arith.mulf %86, %85 : vector<8x128xf32>
    %91 = arith.addf %89, %90 : vector<8x128xf32>
    %92 = math.tanh %91 : vector<8x128xf32>
    %93 = arith.mulf %88, %92 : vector<8x128xf32>
    %c4 = arith.constant 4 : index
    %c0_25 = arith.constant 0 : index
    %c0_26 = arith.constant 0 : index
    %94 = vector.load %arg1[%c4, %c0_25, %c0_26] : memref<8x19x128xf32, #tpu.memory_space<vmem>>, vector<1x19x128xf32>
    %95 = vector.shape_cast %94 : vector<1x19x128xf32> to vector<19x128xf32>
    %cst_27 = arith.constant dense<0.000000e+00> : vector<32x128xf32>
    %96 = tpu.matmul %0, %95, %cst_27 {dimension_numbers = #tpu.dot_dimension_numbers<[1], [0], [0], [1], [0, 0, 1, 1], [], []>} : vector<32x19xf32>, vector<19x128xf32>, vector<32x128xf32> -> vector<32x128xf32>
    %97 = vector.broadcast %2 : vector<32x1xf32> to vector<32x128xf32>
    %98 = arith.addf %96, %97 : vector<32x128xf32>
    %cst_28 = arith.constant dense<0.000000e+00> : vector<32x128xf32>
    %99 = tpu.matmul %1, %93, %cst_28 {dimension_numbers = #tpu.dot_dimension_numbers<[1], [0], [0], [1], [0, 0, 1, 1], [], []>} : vector<32x8xf32>, vector<8x128xf32>, vector<32x128xf32> -> vector<32x128xf32>
    %100 = arith.addf %98, %99 : vector<32x128xf32>
    %101 = vector.extract_strided_slice %100 {offsets = [0, 0], sizes = [24, 128], strides = [1, 1]} : vector<32x128xf32> to vector<24x128xf32>
    %102 = arith.negf %101 : vector<24x128xf32>
    %103 = math.exp %102 : vector<24x128xf32>
    %cst_29 = arith.constant 1.000000e+00 : f32
    %104 = vector.broadcast %cst_29 : f32 to vector<24x128xf32>
    %105 = arith.addf %104, %103 : vector<24x128xf32>
    %106 = arith.divf %104, %105 : vector<24x128xf32>
    %107 = vector.extract_strided_slice %100 {offsets = [24, 0], sizes = [8, 128], strides = [1, 1]} : vector<32x128xf32> to vector<8x128xf32>
    %108 = math.tanh %107 : vector<8x128xf32>
    %109 = vector.extract_strided_slice %106 {offsets = [0, 0], sizes = [8, 128], strides = [1, 1]} : vector<24x128xf32> to vector<8x128xf32>
    %110 = vector.extract_strided_slice %106 {offsets = [8, 0], sizes = [8, 128], strides = [1, 1]} : vector<24x128xf32> to vector<8x128xf32>
    %111 = vector.extract_strided_slice %106 {offsets = [16, 0], sizes = [8, 128], strides = [1, 1]} : vector<24x128xf32> to vector<8x128xf32>
    %112 = arith.mulf %110, %91 : vector<8x128xf32>
    %113 = arith.mulf %109, %108 : vector<8x128xf32>
    %114 = arith.addf %112, %113 : vector<8x128xf32>
    %115 = math.tanh %114 : vector<8x128xf32>
    %116 = arith.mulf %111, %115 : vector<8x128xf32>
    %c5 = arith.constant 5 : index
    %c0_30 = arith.constant 0 : index
    %c0_31 = arith.constant 0 : index
    %117 = vector.load %arg1[%c5, %c0_30, %c0_31] : memref<8x19x128xf32, #tpu.memory_space<vmem>>, vector<1x19x128xf32>
    %118 = vector.shape_cast %117 : vector<1x19x128xf32> to vector<19x128xf32>
    %cst_32 = arith.constant dense<0.000000e+00> : vector<32x128xf32>
    %119 = tpu.matmul %0, %118, %cst_32 {dimension_numbers = #tpu.dot_dimension_numbers<[1], [0], [0], [1], [0, 0, 1, 1], [], []>} : vector<32x19xf32>, vector<19x128xf32>, vector<32x128xf32> -> vector<32x128xf32>
    %120 = vector.broadcast %2 : vector<32x1xf32> to vector<32x128xf32>
    %121 = arith.addf %119, %120 : vector<32x128xf32>
    %cst_33 = arith.constant dense<0.000000e+00> : vector<32x128xf32>
    %122 = tpu.matmul %1, %116, %cst_33 {dimension_numbers = #tpu.dot_dimension_numbers<[1], [0], [0], [1], [0, 0, 1, 1], [], []>} : vector<32x8xf32>, vector<8x128xf32>, vector<32x128xf32> -> vector<32x128xf32>
    %123 = arith.addf %121, %122 : vector<32x128xf32>
    %124 = vector.extract_strided_slice %123 {offsets = [0, 0], sizes = [24, 128], strides = [1, 1]} : vector<32x128xf32> to vector<24x128xf32>
    %125 = arith.negf %124 : vector<24x128xf32>
    %126 = math.exp %125 : vector<24x128xf32>
    %cst_34 = arith.constant 1.000000e+00 : f32
    %127 = vector.broadcast %cst_34 : f32 to vector<24x128xf32>
    %128 = arith.addf %127, %126 : vector<24x128xf32>
    %129 = arith.divf %127, %128 : vector<24x128xf32>
    %130 = vector.extract_strided_slice %123 {offsets = [24, 0], sizes = [8, 128], strides = [1, 1]} : vector<32x128xf32> to vector<8x128xf32>
    %131 = math.tanh %130 : vector<8x128xf32>
    %132 = vector.extract_strided_slice %129 {offsets = [0, 0], sizes = [8, 128], strides = [1, 1]} : vector<24x128xf32> to vector<8x128xf32>
    %133 = vector.extract_strided_slice %129 {offsets = [8, 0], sizes = [8, 128], strides = [1, 1]} : vector<24x128xf32> to vector<8x128xf32>
    %134 = vector.extract_strided_slice %129 {offsets = [16, 0], sizes = [8, 128], strides = [1, 1]} : vector<24x128xf32> to vector<8x128xf32>
    %135 = arith.mulf %133, %114 : vector<8x128xf32>
    %136 = arith.mulf %132, %131 : vector<8x128xf32>
    %137 = arith.addf %135, %136 : vector<8x128xf32>
    %138 = math.tanh %137 : vector<8x128xf32>
    %139 = arith.mulf %134, %138 : vector<8x128xf32>
    %c6 = arith.constant 6 : index
    %c0_35 = arith.constant 0 : index
    %c0_36 = arith.constant 0 : index
    %140 = vector.load %arg1[%c6, %c0_35, %c0_36] : memref<8x19x128xf32, #tpu.memory_space<vmem>>, vector<1x19x128xf32>
    %141 = vector.shape_cast %140 : vector<1x19x128xf32> to vector<19x128xf32>
    %cst_37 = arith.constant dense<0.000000e+00> : vector<32x128xf32>
    %142 = tpu.matmul %0, %141, %cst_37 {dimension_numbers = #tpu.dot_dimension_numbers<[1], [0], [0], [1], [0, 0, 1, 1], [], []>} : vector<32x19xf32>, vector<19x128xf32>, vector<32x128xf32> -> vector<32x128xf32>
    %143 = vector.broadcast %2 : vector<32x1xf32> to vector<32x128xf32>
    %144 = arith.addf %142, %143 : vector<32x128xf32>
    %cst_38 = arith.constant dense<0.000000e+00> : vector<32x128xf32>
    %145 = tpu.matmul %1, %139, %cst_38 {dimension_numbers = #tpu.dot_dimension_numbers<[1], [0], [0], [1], [0, 0, 1, 1], [], []>} : vector<32x8xf32>, vector<8x128xf32>, vector<32x128xf32> -> vector<32x128xf32>
    %146 = arith.addf %144, %145 : vector<32x128xf32>
    %147 = vector.extract_strided_slice %146 {offsets = [0, 0], sizes = [24, 128], strides = [1, 1]} : vector<32x128xf32> to vector<24x128xf32>
    %148 = arith.negf %147 : vector<24x128xf32>
    %149 = math.exp %148 : vector<24x128xf32>
    %cst_39 = arith.constant 1.000000e+00 : f32
    %150 = vector.broadcast %cst_39 : f32 to vector<24x128xf32>
    %151 = arith.addf %150, %149 : vector<24x128xf32>
    %152 = arith.divf %150, %151 : vector<24x128xf32>
    %153 = vector.extract_strided_slice %146 {offsets = [24, 0], sizes = [8, 128], strides = [1, 1]} : vector<32x128xf32> to vector<8x128xf32>
    %154 = math.tanh %153 : vector<8x128xf32>
    %155 = vector.extract_strided_slice %152 {offsets = [0, 0], sizes = [8, 128], strides = [1, 1]} : vector<24x128xf32> to vector<8x128xf32>
    %156 = vector.extract_strided_slice %152 {offsets = [8, 0], sizes = [8, 128], strides = [1, 1]} : vector<24x128xf32> to vector<8x128xf32>
    %157 = vector.extract_strided_slice %152 {offsets = [16, 0], sizes = [8, 128], strides = [1, 1]} : vector<24x128xf32> to vector<8x128xf32>
    %158 = arith.mulf %156, %137 : vector<8x128xf32>
    %159 = arith.mulf %155, %154 : vector<8x128xf32>
    %160 = arith.addf %158, %159 : vector<8x128xf32>
    %161 = math.tanh %160 : vector<8x128xf32>
    %162 = arith.mulf %157, %161 : vector<8x128xf32>
    %c7 = arith.constant 7 : index
    %c0_40 = arith.constant 0 : index
    %c0_41 = arith.constant 0 : index
    %163 = vector.load %arg1[%c7, %c0_40, %c0_41] : memref<8x19x128xf32, #tpu.memory_space<vmem>>, vector<1x19x128xf32>
    %164 = vector.shape_cast %163 : vector<1x19x128xf32> to vector<19x128xf32>
    %cst_42 = arith.constant dense<0.000000e+00> : vector<32x128xf32>
    %165 = tpu.matmul %0, %164, %cst_42 {dimension_numbers = #tpu.dot_dimension_numbers<[1], [0], [0], [1], [0, 0, 1, 1], [], []>} : vector<32x19xf32>, vector<19x128xf32>, vector<32x128xf32> -> vector<32x128xf32>
    %166 = vector.broadcast %2 : vector<32x1xf32> to vector<32x128xf32>
    %167 = arith.addf %165, %166 : vector<32x128xf32>
    %cst_43 = arith.constant dense<0.000000e+00> : vector<32x128xf32>
    %168 = tpu.matmul %1, %162, %cst_43 {dimension_numbers = #tpu.dot_dimension_numbers<[1], [0], [0], [1], [0, 0, 1, 1], [], []>} : vector<32x8xf32>, vector<8x128xf32>, vector<32x128xf32> -> vector<32x128xf32>
    %169 = arith.addf %167, %168 : vector<32x128xf32>
    %170 = vector.extract_strided_slice %169 {offsets = [0, 0], sizes = [24, 128], strides = [1, 1]} : vector<32x128xf32> to vector<24x128xf32>
    %171 = arith.negf %170 : vector<24x128xf32>
    %172 = math.exp %171 : vector<24x128xf32>
    %cst_44 = arith.constant 1.000000e+00 : f32
    %173 = vector.broadcast %cst_44 : f32 to vector<24x128xf32>
    %174 = arith.addf %173, %172 : vector<24x128xf32>
    %175 = arith.divf %173, %174 : vector<24x128xf32>
    %176 = vector.extract_strided_slice %169 {offsets = [24, 0], sizes = [8, 128], strides = [1, 1]} : vector<32x128xf32> to vector<8x128xf32>
    %177 = math.tanh %176 : vector<8x128xf32>
    %178 = vector.extract_strided_slice %175 {offsets = [0, 0], sizes = [8, 128], strides = [1, 1]} : vector<24x128xf32> to vector<8x128xf32>
    %179 = vector.extract_strided_slice %175 {offsets = [8, 0], sizes = [8, 128], strides = [1, 1]} : vector<24x128xf32> to vector<8x128xf32>
    %180 = vector.extract_strided_slice %175 {offsets = [16, 0], sizes = [8, 128], strides = [1, 1]} : vector<24x128xf32> to vector<8x128xf32>
    %181 = arith.mulf %179, %160 : vector<8x128xf32>
    %182 = arith.mulf %178, %177 : vector<8x128xf32>
    %183 = arith.addf %181, %182 : vector<8x128xf32>
    %184 = math.tanh %183 : vector<8x128xf32>
    %185 = arith.mulf %180, %184 : vector<8x128xf32>
    %c0_45 = arith.constant 0 : index
    %c0_46 = arith.constant 0 : index
    %186 = vector.load %arg5[%c0_45, %c0_46] : memref<8x1xf32, #tpu.memory_space<vmem>>, vector<8x1xf32>
    %187 = vector.broadcast %186 : vector<8x1xf32> to vector<8x128xf32>
    %188 = arith.mulf %185, %187 : vector<8x128xf32>
    %cst_47 = arith.constant dense<0.000000e+00> : vector<128xf32>
    %189 = vector.multi_reduction <add>, %188, %cst_47 [0] : vector<8x128xf32> to vector<128xf32>
    %190 = vector.shape_cast %189 : vector<128xf32> to vector<1x128xf32>
    %c0_48 = arith.constant 0 : index
    %c0_49 = arith.constant 0 : index
    %191 = vector.load %arg6[%c0_48, %c0_49] : memref<1x1xf32, #tpu.memory_space<vmem>>, vector<1x1xf32>
    %192 = vector.broadcast %191 : vector<1x1xf32> to vector<1x128xf32>
    %193 = arith.addf %190, %192 : vector<1x128xf32>
    %194 = arith.negf %193 : vector<1x128xf32>
    %195 = math.exp %194 : vector<1x128xf32>
    %cst_50 = arith.constant 1.000000e+00 : f32
    %196 = vector.broadcast %cst_50 : f32 to vector<1x128xf32>
    %197 = arith.addf %196, %195 : vector<1x128xf32>
    %198 = arith.divf %196, %197 : vector<1x128xf32>
    %c0_51 = arith.constant 0 : index
    %c0_52 = arith.constant 0 : index
    %199 = vector.load %arg7[%c0_51, %c0_52] : memref<1x128xf32, #tpu.memory_space<vmem>>, vector<1x128xf32>
    tpu.vector_store %arg7[%c0_51, %c0_52], %198 {strides = array<i32>} : memref<1x128xf32, #tpu.memory_space<vmem>>, vector<1x128xf32>,
    return
  }
  func.func @transform_0(%arg0: i32) -> (i32, i32, i32) {
    %c0_i32 = arith.constant 0 : i32
    %c0_i32_0 = arith.constant 0 : i32
    %c0_i32_1 = arith.constant 0 : i32
    return %c0_i32, %c0_i32_0, %arg0 : i32, i32, i32
  }
  func.func @transform_1(%arg0: i32) -> (i32, i32) {
    %c0_i32 = arith.constant 0 : i32
    %c0_i32_0 = arith.constant 0 : i32
    %c0_i32_1 = arith.constant 0 : i32
    return %c0_i32, %c0_i32_0 : i32, i32
  }
  func.func @transform_2(%arg0: i32) -> (i32, i32) {
    %c0_i32 = arith.constant 0 : i32
    %c0_i32_0 = arith.constant 0 : i32
    %c0_i32_1 = arith.constant 0 : i32
    return %c0_i32, %c0_i32_0 : i32, i32
  }
  func.func @transform_3(%arg0: i32) -> (i32, i32) {
    %c0_i32 = arith.constant 0 : i32
    %c0_i32_0 = arith.constant 0 : i32
    %c0_i32_1 = arith.constant 0 : i32
    return %c0_i32, %c0_i32_0 : i32, i32
  }
  func.func @transform_4(%arg0: i32) -> (i32, i32) {
    %c0_i32 = arith.constant 0 : i32
    %c0_i32_0 = arith.constant 0 : i32
    %c0_i32_1 = arith.constant 0 : i32
    return %c0_i32, %c0_i32_0 : i32, i32
  }
  func.func @transform_5(%arg0: i32) -> (i32, i32) {
    %c0_i32 = arith.constant 0 : i32
    %c0_i32_0 = arith.constant 0 : i32
    %c0_i32_1 = arith.constant 0 : i32
    return %c0_i32, %c0_i32_0 : i32, i32
  }
  func.func @transform_6(%arg0: i32) -> (i32, i32) {
    %c0_i32 = arith.constant 0 : i32
    %c0_i32_0 = arith.constant 0 : i32
    return %c0_i32, %arg0 : i32, i32
  }
}

</mosaic_0001>

<llo_original>
// kernel: lstm_model_forward.1
$region0: #{lstm_model_forward.1}
  #allocation0 [shape = 'u32[]', space=smem, size = 0x4, offset = 0x4, fixed_abs, tag = 'smem constant byte address 0x4 - core index']
  #allocation1 [shape = 'u32[144,128]{1,0:T(1,128)}', space=vmem, size = 0x12000, scoped, tag = 'internal scratch']
  #allocation2 [shape = 'f32[1,1]{1,0:T(1,128)S(1)}', space=vmem, size = 0x200, scoped, tag = 'scoped memory for lstm_model_forward.1']
  %s0 = inlined_call_operand.vmem [shape: f32[8,19,128], index: 0, kind: input, shape index: {}]
  %s1 = inlined_call_operand.vmem [shape: f32[32,19], index: 1, kind: input, shape index: {}]
  %s2 = inlined_call_operand.vmem [shape: f32[32,8], index: 2, kind: input, shape index: {}]
  %s3 = inlined_call_operand.vmem [shape: f32[32,1], index: 3, kind: input, shape index: {}]
  %s4 = inlined_call_operand.vmem [shape: f32[8,1], index: 4, kind: input, shape index: {}]
  %s5 = inlined_call_operand.<no memory space> [shape: f32[1,1], index: 5, kind: input, shape index: {}]
  %s6 = inlined_call_operand.vmem [shape: f32[1,128], index: 6, kind: output, shape index: {}]
  %s7 = sld [smem:[#allocation0]]
  $region34: #{lstm_model_forward.1} parent=0
    _
  %s9 = ssub.s32 1, %s7
  %s10 = scalar_select 0, %s9, %s7
  %v11 = vstv %s5
  %12 = vst [vmem:[#allocation2] sm:$0x1] %v11
  // Predicated region
  $region2: #{lstm_model_forward.1} parent=0 // pred_check
    _
  $region3: #{lstm_model_forward.1} parent=0 // pred_check_branch
    %14 = sbr.rel (0) target = $region5
  $region4: #{lstm_model_forward.1} parent=0 // pred_region
    _
  $region5: #{lstm_model_forward.1} parent=0 // pred_fallthru
    _
  // Predicated region
  $region6: #{lstm_model_forward.1} parent=0 // pred_check
    _
  $region7: #{lstm_model_forward.1} parent=0 // pred_check_branch
    %16 = sbr.rel (0) target = $region9
  $region8: #{lstm_model_forward.1} parent=0 // pred_region
    _
  $region9: #{lstm_model_forward.1} parent=0 // pred_fallthru
    _
  // Predicated region
  $region10: #{lstm_model_forward.1} parent=0 // pred_check
    _
  $region11: #{lstm_model_forward.1} parent=0 // pred_check_branch
    %18 = sbr.rel (0) target = $region13
  $region12: #{lstm_model_forward.1} parent=0 // pred_region
    _
  $region13: #{lstm_model_forward.1} parent=0 // pred_fallthru
    _
  // Predicated region
  $region14: #{lstm_model_forward.1} parent=0 // pred_check
    _
  $region15: #{lstm_model_forward.1} parent=0 // pred_check_branch
    %20 = sbr.rel (0) target = $region17
  $region16: #{lstm_model_forward.1} parent=0 // pred_region
    _
  $region17: #{lstm_model_forward.1} parent=0 // pred_fallthru
    _
  // Predicated region
  $region18: #{lstm_model_forward.1} parent=0 // pred_check
    _
  $region19: #{lstm_model_forward.1} parent=0 // pred_check_branch
    %22 = sbr.rel (0) target = $region21
  $region20: #{lstm_model_forward.1} parent=0 // pred_region
    _
  $region21: #{lstm_model_forward.1} parent=0 // pred_fallthru
    _
  // Predicated region
  $region22: #{lstm_model_forward.1} parent=0 // pred_check
    _
  $region23: #{lstm_model_forward.1} parent=0 // pred_check_branch
    %24 = sbr.rel (0) target = $region25
  $region24: #{lstm_model_forward.1} parent=0 // pred_region
    _
  $region25: #{lstm_model_forward.1} parent=0 // pred_fallthru
    _
  %v25 = vld [vmem:[%s1] sm:$0xff]
  %v26 = vld [vmem:[%s1 + $0x8] sm:$0xff]
  %v27 = vld [vmem:[%s1 + $0x10] sm:$0xff]
  %v28 = vld [vmem:[%s1 + $0x18] sm:$0xff]
  %v29 = vld [vmem:[%s2] sm:$0xff]
  %v30 = vld [vmem:[%s2 + $0x8] sm:$0xff]
  %v31 = vld [vmem:[%s2 + $0x10] sm:$0xff]
  %v32 = vld [vmem:[%s2 + $0x18] sm:$0xff]
  %v33 = vld [vmem:[%s3] sm:$0xff]
  %v34 = vld [vmem:[%s3 + $0x8] sm:$0xff]
  %v35 = vld [vmem:[%s3 + $0x10] sm:$0xff]
  %v36 = vld [vmem:[%s3 + $0x18] sm:$0xff]
  %v37 = vld [vmem:[%s0] sm:$0xff]
  %v38 = vld [vmem:[%s0 + $0x8] sm:$0xff]
  %v39 = vld [vmem:[%s0 + $0x10] sm:$0x7]
  %41 = vset.pattern.permute.xlu0 0
  %42 = vperm.xlu0 %41, %v33
  %v43 = vpop.permute.xlu0 %42
  %46 = vset.pattern.permute.xlu0 0
  %47 = vperm.xlu0 %46, %v34
  %v48 = vpop.permute.xlu0 %47
  %51 = vset.pattern.permute.xlu0 0
  %52 = vperm.xlu0 %51, %v35
  %v53 = vpop.permute.xlu0 %52
  %56 = vset.pattern.permute.xlu0 0
  %57 = vperm.xlu0 %56, %v36
  %v58 = vpop.permute.xlu0 %57
  %vm60 = vcmask 154624
  %v62 = vsel %vm60, %v25, 0
  %v65 = vsel %vm60, %v26, 0
  %v68 = vsel %vm60, %v27, 0
  %v71 = vsel %vm60, %v28, 0
  %vm73 = vcmask 1042432
  %v75 = vsel %vm73, %v39, 0
  %77 = vmatprep.subr.mxu0 0.0
  %78 = vmatpush1.msra.mxu0 %v37
  %79 = vmatprep.subr.mxu0 0.0
  %80 = vmatpush1.msra.mxu0 %v38
  %81 = vmatprep.subr.mxu0 0.0
  %82 = vmatpush1.msra.mxu0 %v75
  %83 = vmatprep.subr.mxu0 0.0
  %84 = vmatpush1.msra.mxu0 0.0
  %85 = vmatprep.subr.mxu0 0.0
  %86 = vmatpush1.msra.mxu0 0.0
  %87 = vmatprep.subr.mxu0 0.0
  %88 = vmatpush1.msra.mxu0 0.0
  %89 = vmatprep.subr.mxu0 0.0
  %90 = vmatpush1.msra.mxu0 0.0
  %91 = vmatprep.subr.mxu0 0.0
  %92 = vmatpush1.msra.mxu0 0.0
  %93 = vmatprep.subr.mxu0 0.0
  %94 = vmatpush1.msra.mxu0 0.0
  %95 = vmatprep.subr.mxu0 0.0
  %96 = vmatpush1.msra.mxu0 0.0
  %97 = vmatprep.subr.mxu0 0.0
  %98 = vmatpush1.msra.mxu0 0.0
  %99 = vmatprep.subr.mxu0 0.0
  %100 = vmatpush1.msra.mxu0 0.0
  %101 = vmatprep.subr.mxu0 0.0
  %102 = vmatpush1.msra.mxu0 0.0
  %103 = vmatprep.subr.mxu0 0.0
  %104 = vmatpush1.msra.mxu0 0.0
  %105 = vmatprep.subr.mxu0 0.0
  %106 = vmatpush1.msra.mxu0 0.0
  %107 = vmatprep.subr.mxu0 0.0
  %108 = vmatpush1.msra.mxu0 0.0
  %109 = vmatprep.subr.mxu0 0.0
  %110 = vmatpush1.msra.mxu0 0.0
  %111 = vmatprep.subr.mxu0 0.0
  %112 = vmatpush1.msra.mxu0 0.0
  %113 = vmatprep.subr.mxu0 0.0
  %114 = vmatpush1.msra.mxu0 0.0
  %115 = vmatprep.subr.mxu0 0.0
  %116 = vmatpush1.msra.mxu0 0.0
  %117 = vmatprep.subr.mxu0 0.0
  %118 = vmatpush1.msra.mxu0 0.0
  %119 = vmatprep.subr.mxu0 0.0
  %120 = vmatpush1.msra.mxu0 0.0
  %121 = vmatprep.subr.mxu0 0.0
  %122 = vmatpush1.msra.mxu0 0.0
  %123 = vmatprep.subr.mxu0 0.0
  %124 = vmatpush1.msra.mxu0 0.0
  %125 = vmatprep.subr.mxu0 0.0
  %126 = vmatpush1.msra.mxu0 0.0
  %127 = vmatprep.subr.mxu0 0.0
  %128 = vmatpush1.msra.mxu0 0.0
  %129 = vmatprep.subr.mxu0 0.0
  %130 = vmatpush1.msra.mxu0 0.0
  %131 = vmatprep.subr.mxu0 0.0
  %132 = vmatpush1.msra.mxu0 0.0
  %133 = vmatprep.subr.mxu0 0.0
  %134 = vmatpush1.msra.mxu0 0.0
  %135 = vmatprep.subr.mxu0 0.0
  %136 = vmatpush1.msra.mxu0 0.0
  %137 = vmatprep.subr.mxu0 0.0
  %138 = vmatpush1.msra.mxu0 0.0
  %139 = vmatprep.subr.mxu0 0.0
  %140 = vmatpush1.msra.mxu0 0.0
  %141 = vmatprep.mubr.f32.mxu0 0.0
  %142 = vmatmul.mubr.f32.gmra.mrb[0].mxu0 %v62
  %v143 = vpop.f32.mrb[0].mxu0
  %v144 = vadd.f32 %v43, %v143
  %v145 = vpop.f32.mrb[0].mxu0
  %146 = vmatprep.mubr.f32.mxu0 0.0
  %147 = vmatmul.mubr.f32.gmra.mrb[0].mxu0 %v65
  %v148 = vpop.f32.mrb[0].mxu0
  %v149 = vadd.f32 %v48, %v148
  %v150 = vpop.f32.mrb[0].mxu0
  %151 = vmatprep.mubr.f32.mxu0 0.0
  %152 = vmatmul.mubr.f32.gmra.mrb[0].mxu0 %v68
  %v153 = vpop.f32.mrb[0].mxu0
  %v154 = vadd.f32 %v53, %v153
  %v155 = vpop.f32.mrb[0].mxu0
  %156 = vmatprep.mubr.f32.mxu0 0.0
  %157 = vmatmul.mubr.f32.gmra.mrb[0].mxu0 %v71
  %v158 = vpop.f32.mrb[0].mxu0
  %v159 = vadd.f32 %v58, %v158
  %v160 = vpop.f32.mrb[0].mxu0
  %161 = vdwg.mxu0
  %v162 = vxor.u32 %v144, 2147483648
  %v163 = vxor.u32 %v149, 2147483648
  %v164 = vxor.u32 %v154, 2147483648
  %v165 = vmul.f32 %v162, 1.442695
  %v166 = vpow.pop %v165
  %v167 = vmul.f32 %v163, 1.442695
  %v168 = vpow.pop %v167
  %v169 = vmul.f32 %v164, 1.442695
  %v170 = vpow.pop %v169
  %v171 = vadd.f32 %v166, 1.0
  %v172 = vadd.f32 %v168, 1.0
  %v173 = vadd.f32 %v170, 1.0
  %v174 = vrcp.pop %v171
  %v175 = vmul.f32 1.0, %v174
  %v176 = vrcp.pop %v172
  %v177 = vmul.f32 1.0, %v176
  %v178 = vrcp.pop %v173
  %v179 = vmul.f32 1.0, %v178
  %v180 = vtanh.pop %v159
  %v181 = vmul.f32 %v177, 0.0
  %v182 = vmul.f32 %v175, %v180
  %v183 = vadd.f32 %v181, %v182
  %v184 = vtanh.pop %v183
  %v185 = vmul.f32 %v179, %v184
  %s186 = scalar_lea.vmem %s0, 24
  %v187 = vld [vmem:[%s186] sm:$0xff]
  %v188 = vld [vmem:[%s186 + $0x8] sm:$0xff]
  %v189 = vld [vmem:[%s186 + $0x10] sm:$0x7]
  %v191 = vsel %vm73, %v189, 0
  %193 = vmatprep.subr.mxu0 0.0
  %194 = vmatpush1.msra.mxu0 %v187
  %195 = vmatprep.subr.mxu0 0.0
  %196 = vmatpush1.msra.mxu0 %v188
  %197 = vmatprep.subr.mxu0 0.0
  %198 = vmatpush1.msra.mxu0 %v191
  %199 = vmatprep.subr.mxu0 0.0
  %200 = vmatpush1.msra.mxu0 0.0
  %201 = vmatprep.subr.mxu0 0.0
  %202 = vmatpush1.msra.mxu0 0.0
  %203 = vmatprep.subr.mxu0 0.0
  %204 = vmatpush1.msra.mxu0 0.0
  %205 = vmatprep.subr.mxu0 0.0
  %206 = vmatpush1.msra.mxu0 0.0
  %207 = vmatprep.subr.mxu0 0.0
  %208 = vmatpush1.msra.mxu0 0.0
  %209 = vmatprep.subr.mxu0 0.0
  %210 = vmatpush1.msra.mxu0 0.0
  %211 = vmatprep.subr.mxu0 0.0
  %212 = vmatpush1.msra.mxu0 0.0
  %213 = vmatprep.subr.mxu0 0.0
  %214 = vmatpush1.msra.mxu0 0.0
  %215 = vmatprep.subr.mxu0 0.0
  %216 = vmatpush1.msra.mxu0 0.0
  %217 = vmatprep.subr.mxu0 0.0
  %218 = vmatpush1.msra.mxu0 0.0
  %219 = vmatprep.subr.mxu0 0.0
  %220 = vmatpush1.msra.mxu0 0.0
  %221 = vmatprep.subr.mxu0 0.0
  %222 = vmatpush1.msra.mxu0 0.0
  %223 = vmatprep.subr.mxu0 0.0
  %224 = vmatpush1.msra.mxu0 0.0
  %225 = vmatprep.subr.mxu0 0.0
  %226 = vmatpush1.msra.mxu0 0.0
  %227 = vmatprep.subr.mxu0 0.0
  %228 = vmatpush1.msra.mxu0 0.0
  %229 = vmatprep.subr.mxu0 0.0
  %230 = vmatpush1.msra.mxu0 0.0
  %231 = vmatprep.subr.mxu0 0.0
  %232 = vmatpush1.msra.mxu0 0.0
  %233 = vmatprep.subr.mxu0 0.0
  %234 = vmatpush1.msra.mxu0 0.0
  %235 = vmatprep.subr.mxu0 0.0
  %236 = vmatpush1.msra.mxu0 0.0
  %237 = vmatprep.subr.mxu0 0.0
  %238 = vmatpush1.msra.mxu0 0.0
  %239 = vmatprep.subr.mxu0 0.0
  %240 = vmatpush1.msra.mxu0 0.0
  %241 = vmatprep.subr.mxu0 0.0
  %242 = vmatpush1.msra.mxu0 0.0
  %243 = vmatprep.subr.mxu0 0.0
  %244 = vmatpush1.msra.mxu0 0.0
  %245 = vmatprep.subr.mxu0 0.0
  %246 = vmatpush1.msra.mxu0 0.0
  %247 = vmatprep.subr.mxu0 0.0
  %248 = vmatpush1.msra.mxu0 0.0
  %249 = vmatprep.subr.mxu0 0.0
  %250 = vmatpush1.msra.mxu0 0.0
  %251 = vmatprep.subr.mxu0 0.0
  %252 = vmatpush1.msra.mxu0 0.0
  %253 = vmatprep.subr.mxu0 0.0
  %254 = vmatpush1.msra.mxu0 0.0
  %255 = vmatprep.subr.mxu0 0.0
  %256 = vmatpush1.msra.mxu0 0.0
  %257 = vmatprep.mubr.f32.mxu0 0.0
  %258 = vmatmul.mubr.f32.gmra.mrb[0].mxu0 %v62
  %v259 = vpop.f32.mrb[0].mxu0
  %v260 = vadd.f32 %v43, %v259
  %v261 = vpop.f32.mrb[0].mxu0
  %262 = vmatprep.mubr.f32.mxu0 0.0
  %263 = vmatmul.mubr.f32.gmra.mrb[0].mxu0 %v65
  %v264 = vpop.f32.mrb[0].mxu0
  %v265 = vadd.f32 %v48, %v264
  %v266 = vpop.f32.mrb[0].mxu0
  %267 = vmatprep.mubr.f32.mxu0 0.0
  %268 = vmatmul.mubr.f32.gmra.mrb[0].mxu0 %v68
  %v269 = vpop.f32.mrb[0].mxu0
  %v270 = vadd.f32 %v53, %v269
  %v271 = vpop.f32.mrb[0].mxu0
  %272 = vmatprep.mubr.f32.mxu0 0.0
  %273 = vmatmul.mubr.f32.gmra.mrb[0].mxu0 %v71
  %v274 = vpop.f32.mrb[0].mxu0
  %v275 = vadd.f32 %v58, %v274
  %v276 = vpop.f32.mrb[0].mxu0
  %277 = vdwg.mxu0
  %vm278 = vcmask 64512
  %v280 = vsel %vm278, %v29, 0
  %v283 = vsel %vm278, %v30, 0
  %v286 = vsel %vm278, %v31, 0
  %v289 = vsel %vm278, %v32, 0
  %291 = vmatprep.subr.mxu0 0.0
  %292 = vmatpush1.msra.mxu0 %v185
  %293 = vmatprep.subr.mxu0 0.0
  %294 = vmatpush1.msra.mxu0 0.0
  %295 = vmatprep.subr.mxu0 0.0
  %296 = vmatpush1.msra.mxu0 0.0
  %297 = vmatprep.subr.mxu0 0.0
  %298 = vmatpush1.msra.mxu0 0.0
  %299 = vmatprep.subr.mxu0 0.0
  %300 = vmatpush1.msra.mxu0 0.0
  %301 = vmatprep.subr.mxu0 0.0
  %302 = vmatpush1.msra.mxu0 0.0
  %303 = vmatprep.subr.mxu0 0.0
  %304 = vmatpush1.msra.mxu0 0.0
  %305 = vmatprep.subr.mxu0 0.0
  %306 = vmatpush1.msra.mxu0 0.0
  %307 = vmatprep.subr.mxu0 0.0
  %308 = vmatpush1.msra.mxu0 0.0
  %309 = vmatprep.subr.mxu0 0.0
  %310 = vmatpush1.msra.mxu0 0.0
  %311 = vmatprep.subr.mxu0 0.0
  %312 = vmatpush1.msra.mxu0 0.0
  %313 = vmatprep.subr.mxu0 0.0
  %314 = vmatpush1.msra.mxu0 0.0
  %315 = vmatprep.subr.mxu0 0.0
  %316 = vmatpush1.msra.mxu0 0.0
  %317 = vmatprep.subr.mxu0 0.0
  %318 = vmatpush1.msra.mxu0 0.0
  %319 = vmatprep.subr.mxu0 0.0
  %320 = vmatpush1.msra.mxu0 0.0
  %321 = vmatprep.subr.mxu0 0.0
  %322 = vmatpush1.msra.mxu0 0.0
  %323 = vmatprep.subr.mxu0 0.0
  %324 = vmatpush1.msra.mxu0 0.0
  %325 = vmatprep.subr.mxu0 0.0
  %326 = vmatpush1.msra.mxu0 0.0
  %327 = vmatprep.subr.mxu0 0.0
  %328 = vmatpush1.msra.mxu0 0.0
  %329 = vmatprep.subr.mxu0 0.0
  %330 = vmatpush1.msra.mxu0 0.0
  %331 = vmatprep.subr.mxu0 0.0
  %332 = vmatpush1.msra.mxu0 0.0
  %333 = vmatprep.subr.mxu0 0.0
  %334 = vmatpush1.msra.mxu0 0.0
  %335 = vmatprep.subr.mxu0 0.0
  %336 = vmatpush1.msra.mxu0 0.0
  %337 = vmatprep.subr.mxu0 0.0
  %338 = vmatpush1.msra.mxu0 0.0
  %339 = vmatprep.subr.mxu0 0.0
  %340 = vmatpush1.msra.mxu0 0.0
  %341 = vmatprep.subr.mxu0 0.0
  %342 = vmatpush1.msra.mxu0 0.0
  %343 = vmatprep.subr.mxu0 0.0
  %344 = vmatpush1.msra.mxu0 0.0
  %345 = vmatprep.subr.mxu0 0.0
  %346 = vmatpush1.msra.mxu0 0.0
  %347 = vmatprep.subr.mxu0 0.0
  %348 = vmatpush1.msra.mxu0 0.0
  %349 = vmatprep.subr.mxu0 0.0
  %350 = vmatpush1.msra.mxu0 0.0
  %351 = vmatprep.subr.mxu0 0.0
  %352 = vmatpush1.msra.mxu0 0.0
  %353 = vmatprep.subr.mxu0 0.0
  %354 = vmatpush1.msra.mxu0 0.0
  %355 = vmatprep.mubr.f32.mxu0 0.0
  %356 = vmatmul.mubr.f32.gmra.mrb[0].mxu0 %v280
  %v357 = vpop.f32.mrb[0].mxu0
  %v358 = vadd.f32 0.0, %v357
  %v359 = vpop.f32.mrb[0].mxu0
  %360 = vmatprep.mubr.f32.mxu0 0.0
  %361 = vmatmul.mubr.f32.gmra.mrb[0].mxu0 %v283
  %v362 = vpop.f32.mrb[0].mxu0
  %v363 = vadd.f32 0.0, %v362
  %v364 = vpop.f32.mrb[0].mxu0
  %365 = vmatprep.mubr.f32.mxu0 0.0
  %366 = vmatmul.mubr.f32.gmra.mrb[0].mxu0 %v286
  %v367 = vpop.f32.mrb[0].mxu0
  %v368 = vadd.f32 0.0, %v367
  %v369 = vpop.f32.mrb[0].mxu0
  %370 = vmatprep.mubr.f32.mxu0 0.0
  %371 = vmatmul.mubr.f32.gmra.mrb[0].mxu0 %v289
  %v372 = vpop.f32.mrb[0].mxu0
  %v373 = vadd.f32 0.0, %v372
  %v374 = vpop.f32.mrb[0].mxu0
  %375 = vdwg.mxu0
  %v376 = vadd.f32 %v260, %v358
  %v377 = vadd.f32 %v265, %v363
  %v378 = vadd.f32 %v270, %v368
  %v379 = vadd.f32 %v275, %v373
  %v380 = vxor.u32 %v376, 2147483648
  %v381 = vxor.u32 %v377, 2147483648
  %v382 = vxor.u32 %v378, 2147483648
  %v383 = vmul.f32 %v380, 1.442695
  %v384 = vpow.pop %v383
  %v385 = vmul.f32 %v381, 1.442695
  %v386 = vpow.pop %v385
  %v387 = vmul.f32 %v382, 1.442695
  %v388 = vpow.pop %v387
  %v389 = vadd.f32 %v384, 1.0
  %v390 = vadd.f32 %v386, 1.0
  %v391 = vadd.f32 %v388, 1.0
  %v392 = vrcp.pop %v389
  %v393 = vmul.f32 1.0, %v392
  %v394 = vrcp.pop %v390
  %v395 = vmul.f32 1.0, %v394
  %v396 = vrcp.pop %v391
  %v397 = vmul.f32 1.0, %v396
  %v398 = vtanh.pop %v379
  %v399 = vmul.f32 %v395, %v183
  %v400 = vmul.f32 %v393, %v398
  %v401 = vadd.f32 %v399, %v400
  %v402 = vtanh.pop %v401
  %v403 = vmul.f32 %v397, %v402
  %s404 = scalar_lea.vmem %s0, 48
  %v405 = vld [vmem:[%s404] sm:$0xff]
  %v406 = vld [vmem:[%s404 + $0x8] sm:$0xff]
  %v407 = vld [vmem:[%s404 + $0x10] sm:$0x7]
  %v409 = vsel %vm73, %v407, 0
  %411 = vmatprep.subr.mxu0 0.0
  %412 = vmatpush1.msra.mxu0 %v405
  %413 = vmatprep.subr.mxu0 0.0
  %414 = vmatpush1.msra.mxu0 %v406
  %415 = vmatprep.subr.mxu0 0.0
  %416 = vmatpush1.msra.mxu0 %v409
  %417 = vmatprep.subr.mxu0 0.0
  %418 = vmatpush1.msra.mxu0 0.0
  %419 = vmatprep.subr.mxu0 0.0
  %420 = vmatpush1.msra.mxu0 0.0
  %421 = vmatprep.subr.mxu0 0.0
  %422 = vmatpush1.msra.mxu0 0.0
  %423 = vmatprep.subr.mxu0 0.0
  %424 = vmatpush1.msra.mxu0 0.0
  %425 = vmatprep.subr.mxu0 0.0
  %426 = vmatpush1.msra.mxu0 0.0
  %427 = vmatprep.subr.mxu0 0.0
  %428 = vmatpush1.msra.mxu0 0.0
  %429 = vmatprep.subr.mxu0 0.0
  %430 = vmatpush1.msra.mxu0 0.0
  %431 = vmatprep.subr.mxu0 0.0
  %432 = vmatpush1.msra.mxu0 0.0
  %433 = vmatprep.subr.mxu0 0.0
  %434 = vmatpush1.msra.mxu0 0.0
  %435 = vmatprep.subr.mxu0 0.0
  %436 = vmatpush1.msra.mxu0 0.0
  %437 = vmatprep.subr.mxu0 0.0
  %438 = vmatpush1.msra.mxu0 0.0
  %439 = vmatprep.subr.mxu0 0.0
  %440 = vmatpush1.msra.mxu0 0.0
  %441 = vmatprep.subr.mxu0 0.0
  %442 = vmatpush1.msra.mxu0 0.0
  %443 = vmatprep.subr.mxu0 0.0
  %444 = vmatpush1.msra.mxu0 0.0
  %445 = vmatprep.subr.mxu0 0.0
  %446 = vmatpush1.msra.mxu0 0.0
  %447 = vmatprep.subr.mxu0 0.0
  %448 = vmatpush1.msra.mxu0 0.0
  %449 = vmatprep.subr.mxu0 0.0
  %450 = vmatpush1.msra.mxu0 0.0
  %451 = vmatprep.subr.mxu0 0.0
  %452 = vmatpush1.msra.mxu0 0.0
  %453 = vmatprep.subr.mxu0 0.0
  %454 = vmatpush1.msra.mxu0 0.0
  %455 = vmatprep.subr.mxu0 0.0
  %456 = vmatpush1.msra.mxu0 0.0
  %457 = vmatprep.subr.mxu0 0.0
  %458 = vmatpush1.msra.mxu0 0.0
  %459 = vmatprep.subr.mxu0 0.0
  %460 = vmatpush1.msra.mxu0 0.0
  %461 = vmatprep.subr.mxu0 0.0
  %462 = vmatpush1.msra.mxu0 0.0
  %463 = vmatprep.subr.mxu0 0.0
  %464 = vmatpush1.msra.mxu0 0.0
  %465 = vmatprep.subr.mxu0 0.0
  %466 = vmatpush1.msra.mxu0 0.0
  %467 = vmatprep.subr.mxu0 0.0
  %468 = vmatpush1.msra.mxu0 0.0
  %469 = vmatprep.subr.mxu0 0.0
  %470 = vmatpush1.msra.mxu0 0.0
  %471 = vmatprep.subr.mxu0 0.0
  %472 = vmatpush1.msra.mxu0 0.0
  %473 = vmatprep.subr.mxu0 0.0
  %474 = vmatpush1.msra.mxu0 0.0
  %475 = vmatprep.mubr.f32.mxu0 0.0
  %476 = vmatmul.mubr.f32.gmra.mrb[0].mxu0 %v62
  %v477 = vpop.f32.mrb[0].mxu0
  %v478 = vadd.f32 %v43, %v477
  %v479 = vpop.f32.mrb[0].mxu0
  %480 = vmatprep.mubr.f32.mxu0 0.0
  %481 = vmatmul.mubr.f32.gmra.mrb[0].mxu0 %v65
  %v482 = vpop.f32.mrb[0].mxu0
  %v483 = vadd.f32 %v48, %v482
  %v484 = vpop.f32.mrb[0].mxu0
  %485 = vmatprep.mubr.f32.mxu0 0.0
  %486 = vmatmul.mubr.f32.gmra.mrb[0].mxu0 %v68
  %v487 = vpop.f32.mrb[0].mxu0
  %v488 = vadd.f32 %v53, %v487
  %v489 = vpop.f32.mrb[0].mxu0
  %490 = vmatprep.mubr.f32.mxu0 0.0
  %491 = vmatmul.mubr.f32.gmra.mrb[0].mxu0 %v71
  %v492 = vpop.f32.mrb[0].mxu0
  %v493 = vadd.f32 %v58, %v492
  %v494 = vpop.f32.mrb[0].mxu0
  %495 = vdwg.mxu0
  %496 = vmatprep.subr.mxu0 0.0
  %497 = vmatpush1.msra.mxu0 %v403
  %498 = vmatprep.subr.mxu0 0.0
  %499 = vmatpush1.msra.mxu0 0.0
  %500 = vmatprep.subr.mxu0 0.0
  %501 = vmatpush1.msra.mxu0 0.0
  %502 = vmatprep.subr.mxu0 0.0
  %503 = vmatpush1.msra.mxu0 0.0
  %504 = vmatprep.subr.mxu0 0.0
  %505 = vmatpush1.msra.mxu0 0.0
  %506 = vmatprep.subr.mxu0 0.0
  %507 = vmatpush1.msra.mxu0 0.0
  %508 = vmatprep.subr.mxu0 0.0
  %509 = vmatpush1.msra.mxu0 0.0
  %510 = vmatprep.subr.mxu0 0.0
  %511 = vmatpush1.msra.mxu0 0.0
  %512 = vmatprep.subr.mxu0 0.0
  %513 = vmatpush1.msra.mxu0 0.0
  %514 = vmatprep.subr.mxu0 0.0
  %515 = vmatpush1.msra.mxu0 0.0
  %516 = vmatprep.subr.mxu0 0.0
  %517 = vmatpush1.msra.mxu0 0.0
  %518 = vmatprep.subr.mxu0 0.0
  %519 = vmatpush1.msra.mxu0 0.0
  %520 = vmatprep.subr.mxu0 0.0
  %521 = vmatpush1.msra.mxu0 0.0
  %522 = vmatprep.subr.mxu0 0.0
  %523 = vmatpush1.msra.mxu0 0.0
  %524 = vmatprep.subr.mxu0 0.0
  %525 = vmatpush1.msra.mxu0 0.0
  %526 = vmatprep.subr.mxu0 0.0
  %527 = vmatpush1.msra.mxu0 0.0
  %528 = vmatprep.subr.mxu0 0.0
  %529 = vmatpush1.msra.mxu0 0.0
  %530 = vmatprep.subr.mxu0 0.0
  %531 = vmatpush1.msra.mxu0 0.0
  %532 = vmatprep.subr.mxu0 0.0
  %533 = vmatpush1.msra.mxu0 0.0
  %534 = vmatprep.subr.mxu0 0.0
  %535 = vmatpush1.msra.mxu0 0.0
  %536 = vmatprep.subr.mxu0 0.0
  %537 = vmatpush1.msra.mxu0 0.0
  %538 = vmatprep.subr.mxu0 0.0
  %539 = vmatpush1.msra.mxu0 0.0
  %540 = vmatprep.subr.mxu0 0.0
  %541 = vmatpush1.msra.mxu0 0.0
  %542 = vmatprep.subr.mxu0 0.0
  %543 = vmatpush1.msra.mxu0 0.0
  %544 = vmatprep.subr.mxu0 0.0
  %545 = vmatpush1.msra.mxu0 0.0
  %546 = vmatprep.subr.mxu0 0.0
  %547 = vmatpush1.msra.mxu0 0.0
  %548 = vmatprep.subr.mxu0 0.0
  %549 = vmatpush1.msra.mxu0 0.0
  %550 = vmatprep.subr.mxu0 0.0
  %551 = vmatpush1.msra.mxu0 0.0
  %552 = vmatprep.subr.mxu0 0.0
  %553 = vmatpush1.msra.mxu0 0.0
  %554 = vmatprep.subr.mxu0 0.0
  %555 = vmatpush1.msra.mxu0 0.0
  %556 = vmatprep.subr.mxu0 0.0
  %557 = vmatpush1.msra.mxu0 0.0
  %558 = vmatprep.subr.mxu0 0.0
  %559 = vmatpush1.msra.mxu0 0.0
  %560 = vmatprep.mubr.f32.mxu0 0.0
  %561 = vmatmul.mubr.f32.gmra.mrb[0].mxu0 %v280
  %v562 = vpop.f32.mrb[0].mxu0
  %v563 = vadd.f32 0.0, %v562
  %v564 = vpop.f32.mrb[0].mxu0
  %565 = vmatprep.mubr.f32.mxu0 0.0
  %566 = vmatmul.mubr.f32.gmra.mrb[0].mxu0 %v283
  %v567 = vpop.f32.mrb[0].mxu0
  %v568 = vadd.f32 0.0, %v567
  %v569 = vpop.f32.mrb[0].mxu0
  %570 = vmatprep.mubr.f32.mxu0 0.0
  %571 = vmatmul.mubr.f32.gmra.mrb[0].mxu0 %v286
  %v572 = vpop.f32.mrb[0].mxu0
  %v573 = vadd.f32 0.0, %v572
  %v574 = vpop.f32.mrb[0].mxu0
  %575 = vmatprep.mubr.f32.mxu0 0.0
  %576 = vmatmul.mubr.f32.gmra.mrb[0].mxu0 %v289
  %v577 = vpop.f32.mrb[0].mxu0
  %v578 = vadd.f32 0.0, %v577
  %v579 = vpop.f32.mrb[0].mxu0
  %580 = vdwg.mxu0
  %v581 = vadd.f32 %v478, %v563
  %v582 = vadd.f32 %v483, %v568
  %v583 = vadd.f32 %v488, %v573
  %v584 = vadd.f32 %v493, %v578
  %v585 = vxor.u32 %v581, 2147483648
  %v586 = vxor.u32 %v582, 2147483648
  %v587 = vxor.u32 %v583, 2147483648
  %v588 = vmul.f32 %v585, 1.442695
  %v589 = vpow.pop %v588
  %v590 = vmul.f32 %v586, 1.442695
  %v591 = vpow.pop %v590
  %v592 = vmul.f32 %v587, 1.442695
  %v593 = vpow.pop %v592
  %v594 = vadd.f32 %v589, 1.0
  %v595 = vadd.f32 %v591, 1.0
  %v596 = vadd.f32 %v593, 1.0
  %v597 = vrcp.pop %v594
  %v598 = vmul.f32 1.0, %v597
  %v599 = vrcp.pop %v595
  %v600 = vmul.f32 1.0, %v599
  %v601 = vrcp.pop %v596
  %v602 = vmul.f32 1.0, %v601
  %v603 = vtanh.pop %v584
  %v604 = vmul.f32 %v600, %v401
  %v605 = vmul.f32 %v598, %v603
  %v606 = vadd.f32 %v604, %v605
  %v607 = vtanh.pop %v606
  %v608 = vmul.f32 %v602, %v607
  %s609 = scalar_lea.vmem %s0, 72
  %v610 = vld [vmem:[%s609] sm:$0xff]
  %v611 = vld [vmem:[%s609 + $0x8] sm:$0xff]
  %v612 = vld [vmem:[%s609 + $0x10] sm:$0x7]
  %v614 = vsel %vm73, %v612, 0
  %616 = vmatprep.subr.mxu0 0.0
  %617 = vmatpush1.msra.mxu0 %v610
  %618 = vmatprep.subr.mxu0 0.0
  %619 = vmatpush1.msra.mxu0 %v611
  %620 = vmatprep.subr.mxu0 0.0
  %621 = vmatpush1.msra.mxu0 %v614
  %622 = vmatprep.subr.mxu0 0.0
  %623 = vmatpush1.msra.mxu0 0.0
  %624 = vmatprep.subr.mxu0 0.0
  %625 = vmatpush1.msra.mxu0 0.0
  %626 = vmatprep.subr.mxu0 0.0
  %627 = vmatpush1.msra.mxu0 0.0
  %628 = vmatprep.subr.mxu0 0.0
  %629 = vmatpush1.msra.mxu0 0.0
  %630 = vmatprep.subr.mxu0 0.0
  %631 = vmatpush1.msra.mxu0 0.0
  %632 = vmatprep.subr.mxu0 0.0
  %633 = vmatpush1.msra.mxu0 0.0
  %634 = vmatprep.subr.mxu0 0.0
  %635 = vmatpush1.msra.mxu0 0.0
  %636 = vmatprep.subr.mxu0 0.0
  %637 = vmatpush1.msra.mxu0 0.0
  %638 = vmatprep.subr.mxu0 0.0
  %639 = vmatpush1.msra.mxu0 0.0
  %640 = vmatprep.subr.mxu0 0.0
  %641 = vmatpush1.msra.mxu0 0.0
  %642 = vmatprep.subr.mxu0 0.0
  %643 = vmatpush1.msra.mxu0 0.0
  %644 = vmatprep.subr.mxu0 0.0
  %645 = vmatpush1.msra.mxu0 0.0
  %646 = vmatprep.subr.mxu0 0.0
  %647 = vmatpush1.msra.mxu0 0.0
  %648 = vmatprep.subr.mxu0 0.0
  %649 = vmatpush1.msra.mxu0 0.0
  %650 = vmatprep.subr.mxu0 0.0
  %651 = vmatpush1.msra.mxu0 0.0
  %652 = vmatprep.subr.mxu0 0.0
  %653 = vmatpush1.msra.mxu0 0.0
  %654 = vmatprep.subr.mxu0 0.0
  %655 = vmatpush1.msra.mxu0 0.0
  %656 = vmatprep.subr.mxu0 0.0
  %657 = vmatpush1.msra.mxu0 0.0
  %658 = vmatprep.subr.mxu0 0.0
  %659 = vmatpush1.msra.mxu0 0.0
  %660 = vmatprep.subr.mxu0 0.0
  %661 = vmatpush1.msra.mxu0 0.0
  %662 = vmatprep.subr.mxu0 0.0
  %663 = vmatpush1.msra.mxu0 0.0
  %664 = vmatprep.subr.mxu0 0.0
  %665 = vmatpush1.msra.mxu0 0.0
  %666 = vmatprep.subr.mxu0 0.0
  %667 = vmatpush1.msra.mxu0 0.0
  %668 = vmatprep.subr.mxu0 0.0
  %669 = vmatpush1.msra.mxu0 0.0
  %670 = vmatprep.subr.mxu0 0.0
  %671 = vmatpush1.msra.mxu0 0.0
  %672 = vmatprep.subr.mxu0 0.0
  %673 = vmatpush1.msra.mxu0 0.0
  %674 = vmatprep.subr.mxu0 0.0
  %675 = vmatpush1.msra.mxu0 0.0
  %676 = vmatprep.subr.mxu0 0.0
  %677 = vmatpush1.msra.mxu0 0.0
  %678 = vmatprep.subr.mxu0 0.0
  %679 = vmatpush1.msra.mxu0 0.0
  %680 = vmatprep.mubr.f32.mxu0 0.0
  %681 = vmatmul.mubr.f32.gmra.mrb[0].mxu0 %v62
  %v682 = vpop.f32.mrb[0].mxu0
  %v683 = vadd.f32 %v43, %v682
  %v684 = vpop.f32.mrb[0].mxu0
  %685 = vmatprep.mubr.f32.mxu0 0.0
  %686 = vmatmul.mubr.f32.gmra.mrb[0].mxu0 %v65
  %v687 = vpop.f32.mrb[0].mxu0
  %v688 = vadd.f32 %v48, %v687
  %v689 = vpop.f32.mrb[0].mxu0
  %690 = vmatprep.mubr.f32.mxu0 0.0
  %691 = vmatmul.mubr.f32.gmra.mrb[0].mxu0 %v68
  %v692 = vpop.f32.mrb[0].mxu0
  %v693 = vadd.f32 %v53, %v692
  %v694 = vpop.f32.mrb[0].mxu0
  %695 = vmatprep.mubr.f32.mxu0 0.0
  %696 = vmatmul.mubr.f32.gmra.mrb[0].mxu0 %v71
  %v697 = vpop.f32.mrb[0].mxu0
  %v698 = vadd.f32 %v58, %v697
  %v699 = vpop.f32.mrb[0].mxu0
  %700 = vdwg.mxu0
  %701 = vmatprep.subr.mxu0 0.0
  %702 = vmatpush1.msra.mxu0 %v608
  %703 = vmatprep.subr.mxu0 0.0
  %704 = vmatpush1.msra.mxu0 0.0
  %705 = vmatprep.subr.mxu0 0.0
  %706 = vmatpush1.msra.mxu0 0.0
  %707 = vmatprep.subr.mxu0 0.0
  %708 = vmatpush1.msra.mxu0 0.0
  %709 = vmatprep.subr.mxu0 0.0
  %710 = vmatpush1.msra.mxu0 0.0
  %711 = vmatprep.subr.mxu0 0.0
  %712 = vmatpush1.msra.mxu0 0.0
  %713 = vmatprep.subr.mxu0 0.0
  %714 = vmatpush1.msra.mxu0 0.0
  %715 = vmatprep.subr.mxu0 0.0
  %716 = vmatpush1.msra.mxu0 0.0
  %717 = vmatprep.subr.mxu0 0.0
  %718 = vmatpush1.msra.mxu0 0.0
  %719 = vmatprep.subr.mxu0 0.0
  %720 = vmatpush1.msra.mxu0 0.0
  %721 = vmatprep.subr.mxu0 0.0
  %722 = vmatpush1.msra.mxu0 0.0
  %723 = vmatprep.subr.mxu0 0.0
  %724 = vmatpush1.msra.mxu0 0.0
  %725 = vmatprep.subr.mxu0 0.0
  %726 = vmatpush1.msra.mxu0 0.0
  %727 = vmatprep.subr.mxu0 0.0
  %728 = vmatpush1.msra.mxu0 0.0
  %729 = vmatprep.subr.mxu0 0.0
  %730 = vmatpush1.msra.mxu0 0.0
  %731 = vmatprep.subr.mxu0 0.0
  %732 = vmatpush1.msra.mxu0 0.0
  %733 = vmatprep.subr.mxu0 0.0
  %734 = vmatpush1.msra.mxu0 0.0
  %735 = vmatprep.subr.mxu0 0.0
  %736 = vmatpush1.msra.mxu0 0.0
  %737 = vmatprep.subr.mxu0 0.0
  %738 = vmatpush1.msra.mxu0 0.0
  %739 = vmatprep.subr.mxu0 0.0
  %740 = vmatpush1.msra.mxu0 0.0
  %741 = vmatprep.subr.mxu0 0.0
  %742 = vmatpush1.msra.mxu0 0.0
  %743 = vmatprep.subr.mxu0 0.0
  %744 = vmatpush1.msra.mxu0 0.0
  %745 = vmatprep.subr.mxu0 0.0
  %746 = vmatpush1.msra.mxu0 0.0
  %747 = vmatprep.subr.mxu0 0.0
  %748 = vmatpush1.msra.mxu0 0.0
  %749 = vmatprep.subr.mxu0 0.0
  %750 = vmatpush1.msra.mxu0 0.0
  %751 = vmatprep.subr.mxu0 0.0
  %752 = vmatpush1.msra.mxu0 0.0
  %753 = vmatprep.subr.mxu0 0.0
  %754 = vmatpush1.msra.mxu0 0.0
  %755 = vmatprep.subr.mxu0 0.0
  %756 = vmatpush1.msra.mxu0 0.0
  %757 = vmatprep.subr.mxu0 0.0
  %758 = vmatpush1.msra.mxu0 0.0
  %759 = vmatprep.subr.mxu0 0.0
  %760 = vmatpush1.msra.mxu0 0.0
  %761 = vmatprep.subr.mxu0 0.0
  %762 = vmatpush1.msra.mxu0 0.0
  %763 = vmatprep.subr.mxu0 0.0
  %764 = vmatpush1.msra.mxu0 0.0
  %765 = vmatprep.mubr.f32.mxu0 0.0
  %766 = vmatmul.mubr.f32.gmra.mrb[0].mxu0 %v280
  %v767 = vpop.f32.mrb[0].mxu0
  %v768 = vadd.f32 0.0, %v767
  %v769 = vpop.f32.mrb[0].mxu0
  %770 = vmatprep.mubr.f32.mxu0 0.0
  %771 = vmatmul.mubr.f32.gmra.mrb[0].mxu0 %v283
  %v772 = vpop.f32.mrb[0].mxu0
  %v773 = vadd.f32 0.0, %v772
  %v774 = vpop.f32.mrb[0].mxu0
  %775 = vmatprep.mubr.f32.mxu0 0.0
  %776 = vmatmul.mubr.f32.gmra.mrb[0].mxu0 %v286
  %v777 = vpop.f32.mrb[0].mxu0
  %v778 = vadd.f32 0.0, %v777
  %v779 = vpop.f32.mrb[0].mxu0
  %780 = vmatprep.mubr.f32.mxu0 0.0
  %781 = vmatmul.mubr.f32.gmra.mrb[0].mxu0 %v289
  %v782 = vpop.f32.mrb[0].mxu0
  %v783 = vadd.f32 0.0, %v782
  %v784 = vpop.f32.mrb[0].mxu0
  %785 = vdwg.mxu0
  %v786 = vadd.f32 %v683, %v768
  %v787 = vadd.f32 %v688, %v773
  %v788 = vadd.f32 %v693, %v778
  %v789 = vadd.f32 %v698, %v783
  %v790 = vxor.u32 %v786, 2147483648
  %v791 = vxor.u32 %v787, 2147483648
  %v792 = vxor.u32 %v788, 2147483648
  %v793 = vmul.f32 %v790, 1.442695
  %v794 = vpow.pop %v793
  %v795 = vmul.f32 %v791, 1.442695
  %v796 = vpow.pop %v795
  %v797 = vmul.f32 %v792, 1.442695
  %v798 = vpow.pop %v797
  %v799 = vadd.f32 %v794, 1.0
  %v800 = vadd.f32 %v796, 1.0
  %v801 = vadd.f32 %v798, 1.0
  %v802 = vrcp.pop %v799
  %v803 = vmul.f32 1.0, %v802
  %v804 = vrcp.pop %v800
  %v805 = vmul.f32 1.0, %v804
  %v806 = vrcp.pop %v801
  %v807 = vmul.f32 1.0, %v806
  %v808 = vtanh.pop %v789
  %v809 = vmul.f32 %v805, %v606
  %v810 = vmul.f32 %v803, %v808
  %v811 = vadd.f32 %v809, %v810
  %v812 = vtanh.pop %v811
  %v813 = vmul.f32 %v807, %v812
  %s814 = scalar_lea.vmem %s0, 96
  %v815 = vld [vmem:[%s814] sm:$0xff]
  %v816 = vld [vmem:[%s814 + $0x8] sm:$0xff]
  %v817 = vld [vmem:[%s814 + $0x10] sm:$0x7]
  %v819 = vsel %vm73, %v817, 0
  %821 = vmatprep.subr.mxu0 0.0
  %822 = vmatpush1.msra.mxu0 %v815
  %823 = vmatprep.subr.mxu0 0.0
  %824 = vmatpush1.msra.mxu0 %v816
  %825 = vmatprep.subr.mxu0 0.0
  %826 = vmatpush1.msra.mxu0 %v819
  %827 = vmatprep.subr.mxu0 0.0
  %828 = vmatpush1.msra.mxu0 0.0
  %829 = vmatprep.subr.mxu0 0.0
  %830 = vmatpush1.msra.mxu0 0.0
  %831 = vmatprep.subr.mxu0 0.0
  %832 = vmatpush1.msra.mxu0 0.0
  %833 = vmatprep.subr.mxu0 0.0
  %834 = vmatpush1.msra.mxu0 0.0
  %835 = vmatprep.subr.mxu0 0.0
  %836 = vmatpush1.msra.mxu0 0.0
  %837 = vmatprep.subr.mxu0 0.0
  %838 = vmatpush1.msra.mxu0 0.0
  %839 = vmatprep.subr.mxu0 0.0
  %840 = vmatpush1.msra.mxu0 0.0
  %841 = vmatprep.subr.mxu0 0.0
  %842 = vmatpush1.msra.mxu0 0.0
  %843 = vmatprep.subr.mxu0 0.0
  %844 = vmatpush1.msra.mxu0 0.0
  %845 = vmatprep.subr.mxu0 0.0
  %846 = vmatpush1.msra.mxu0 0.0
  %847 = vmatprep.subr.mxu0 0.0
  %848 = vmatpush1.msra.mxu0 0.0
  %849 = vmatprep.subr.mxu0 0.0
  %850 = vmatpush1.msra.mxu0 0.0
  %851 = vmatprep.subr.mxu0 0.0
  %852 = vmatpush1.msra.mxu0 0.0
  %853 = vmatprep.subr.mxu0 0.0
  %854 = vmatpush1.msra.mxu0 0.0
  %855 = vmatprep.subr.mxu0 0.0
  %856 = vmatpush1.msra.mxu0 0.0
  %857 = vmatprep.subr.mxu0 0.0
  %858 = vmatpush1.msra.mxu0 0.0
  %859 = vmatprep.subr.mxu0 0.0
  %860 = vmatpush1.msra.mxu0 0.0
  %861 = vmatprep.subr.mxu0 0.0
  %862 = vmatpush1.msra.mxu0 0.0
  %863 = vmatprep.subr.mxu0 0.0
  %864 = vmatpush1.msra.mxu0 0.0
  %865 = vmatprep.subr.mxu0 0.0
  %866 = vmatpush1.msra.mxu0 0.0
  %867 = vmatprep.subr.mxu0 0.0
  %868 = vmatpush1.msra.mxu0 0.0
  %869 = vmatprep.subr.mxu0 0.0
  %870 = vmatpush1.msra.mxu0 0.0
  %871 = vmatprep.subr.mxu0 0.0
  %872 = vmatpush1.msra.mxu0 0.0
  %873 = vmatprep.subr.mxu0 0.0
  %874 = vmatpush1.msra.mxu0 0.0
  %875 = vmatprep.subr.mxu0 0.0
  %876 = vmatpush1.msra.mxu0 0.0
  %877 = vmatprep.subr.mxu0 0.0
  %878 = vmatpush1.msra.mxu0 0.0
  %879 = vmatprep.subr.mxu0 0.0
  %880 = vmatpush1.msra.mxu0 0.0
  %881 = vmatprep.subr.mxu0 0.0
  %882 = vmatpush1.msra.mxu0 0.0
  %883 = vmatprep.subr.mxu0 0.0
  %884 = vmatpush1.msra.mxu0 0.0
  %885 = vmatprep.mubr.f32.mxu0 0.0
  %886 = vmatmul.mubr.f32.gmra.mrb[0].mxu0 %v62
  %v887 = vpop.f32.mrb[0].mxu0
  %v888 = vadd.f32 %v43, %v887
  %v889 = vpop.f32.mrb[0].mxu0
  %890 = vmatprep.mubr.f32.mxu0 0.0
  %891 = vmatmul.mubr.f32.gmra.mrb[0].mxu0 %v65
  %v892 = vpop.f32.mrb[0].mxu0
  %v893 = vadd.f32 %v48, %v892
  %v894 = vpop.f32.mrb[0].mxu0
  %895 = vmatprep.mubr.f32.mxu0 0.0
  %896 = vmatmul.mubr.f32.gmra.mrb[0].mxu0 %v68
  %v897 = vpop.f32.mrb[0].mxu0
  %v898 = vadd.f32 %v53, %v897
  %v899 = vpop.f32.mrb[0].mxu0
  %900 = vmatprep.mubr.f32.mxu0 0.0
  %901 = vmatmul.mubr.f32.gmra.mrb[0].mxu0 %v71
  %v902 = vpop.f32.mrb[0].mxu0
  %v903 = vadd.f32 %v58, %v902
  %v904 = vpop.f32.mrb[0].mxu0
  %905 = vdwg.mxu0
  %906 = vmatprep.subr.mxu0 0.0
  %907 = vmatpush1.msra.mxu0 %v813
  %908 = vmatprep.subr.mxu0 0.0
  %909 = vmatpush1.msra.mxu0 0.0
  %910 = vmatprep.subr.mxu0 0.0
  %911 = vmatpush1.msra.mxu0 0.0
  %912 = vmatprep.subr.mxu0 0.0
  %913 = vmatpush1.msra.mxu0 0.0
  %914 = vmatprep.subr.mxu0 0.0
  %915 = vmatpush1.msra.mxu0 0.0
  %916 = vmatprep.subr.mxu0 0.0
  %917 = vmatpush1.msra.mxu0 0.0
  %918 = vmatprep.subr.mxu0 0.0
  %919 = vmatpush1.msra.mxu0 0.0
  %920 = vmatprep.subr.mxu0 0.0
  %921 = vmatpush1.msra.mxu0 0.0
  %922 = vmatprep.subr.mxu0 0.0
  %923 = vmatpush1.msra.mxu0 0.0
  %924 = vmatprep.subr.mxu0 0.0
  %925 = vmatpush1.msra.mxu0 0.0
  %926 = vmatprep.subr.mxu0 0.0
  %927 = vmatpush1.msra.mxu0 0.0
  %928 = vmatprep.subr.mxu0 0.0
  %929 = vmatpush1.msra.mxu0 0.0
  %930 = vmatprep.subr.mxu0 0.0
  %931 = vmatpush1.msra.mxu0 0.0
  %932 = vmatprep.subr.mxu0 0.0
  %933 = vmatpush1.msra.mxu0 0.0
  %934 = vmatprep.subr.mxu0 0.0
  %935 = vmatpush1.msra.mxu0 0.0
  %936 = vmatprep.subr.mxu0 0.0
  %937 = vmatpush1.msra.mxu0 0.0
  %938 = vmatprep.subr.mxu0 0.0
  %939 = vmatpush1.msra.mxu0 0.0
  %940 = vmatprep.subr.mxu0 0.0
  %941 = vmatpush1.msra.mxu0 0.0
  %942 = vmatprep.subr.mxu0 0.0
  %943 = vmatpush1.msra.mxu0 0.0
  %944 = vmatprep.subr.mxu0 0.0
  %945 = vmatpush1.msra.mxu0 0.0
  %946 = vmatprep.subr.mxu0 0.0
  %947 = vmatpush1.msra.mxu0 0.0
  %948 = vmatprep.subr.mxu0 0.0
  %949 = vmatpush1.msra.mxu0 0.0
  %950 = vmatprep.subr.mxu0 0.0
  %951 = vmatpush1.msra.mxu0 0.0
  %952 = vmatprep.subr.mxu0 0.0
  %953 = vmatpush1.msra.mxu0 0.0
  %954 = vmatprep.subr.mxu0 0.0
  %955 = vmatpush1.msra.mxu0 0.0
  %956 = vmatprep.subr.mxu0 0.0
  %957 = vmatpush1.msra.mxu0 0.0
  %958 = vmatprep.subr.mxu0 0.0
  %959 = vmatpush1.msra.mxu0 0.0
  %960 = vmatprep.subr.mxu0 0.0
  %961 = vmatpush1.msra.mxu0 0.0
  %962 = vmatprep.subr.mxu0 0.0
  %963 = vmatpush1.msra.mxu0 0.0
  %964 = vmatprep.subr.mxu0 0.0
  %965 = vmatpush1.msra.mxu0 0.0
  %966 = vmatprep.subr.mxu0 0.0
  %967 = vmatpush1.msra.mxu0 0.0
  %968 = vmatprep.subr.mxu0 0.0
  %969 = vmatpush1.msra.mxu0 0.0
  %970 = vmatprep.mubr.f32.mxu0 0.0
  %971 = vmatmul.mubr.f32.gmra.mrb[0].mxu0 %v280
  %v972 = vpop.f32.mrb[0].mxu0
  %v973 = vadd.f32 0.0, %v972
  %v974 = vpop.f32.mrb[0].mxu0
  %975 = vmatprep.mubr.f32.mxu0 0.0
  %976 = vmatmul.mubr.f32.gmra.mrb[0].mxu0 %v283
  %v977 = vpop.f32.mrb[0].mxu0
  %v978 = vadd.f32 0.0, %v977
  %v979 = vpop.f32.mrb[0].mxu0
  %980 = vmatprep.mubr.f32.mxu0 0.0
  %981 = vmatmul.mubr.f32.gmra.mrb[0].mxu0 %v286
  %v982 = vpop.f32.mrb[0].mxu0
  %v983 = vadd.f32 0.0, %v982
  %v984 = vpop.f32.mrb[0].mxu0
  %985 = vmatprep.mubr.f32.mxu0 0.0
  %986 = vmatmul.mubr.f32.gmra.mrb[0].mxu0 %v289
  %v987 = vpop.f32.mrb[0].mxu0
  %v988 = vadd.f32 0.0, %v987
  %v989 = vpop.f32.mrb[0].mxu0
  %990 = vdwg.mxu0
  %v991 = vadd.f32 %v888, %v973
  %v992 = vadd.f32 %v893, %v978
  %v993 = vadd.f32 %v898, %v983
  %v994 = vadd.f32 %v903, %v988
  %v995 = vxor.u32 %v991, 2147483648
  %v996 = vxor.u32 %v992, 2147483648
  %v997 = vxor.u32 %v993, 2147483648
  %v998 = vmul.f32 %v995, 1.442695
  %v999 = vpow.pop %v998
  %v1000 = vmul.f32 %v996, 1.442695
  %v1001 = vpow.pop %v1000
  %v1002 = vmul.f32 %v997, 1.442695
  %v1003 = vpow.pop %v1002
  %v1004 = vadd.f32 %v999, 1.0
  %v1005 = vadd.f32 %v1001, 1.0
  %v1006 = vadd.f32 %v1003, 1.0
  %v1007 = vrcp.pop %v1004
  %v1008 = vmul.f32 1.0, %v1007
  %v1009 = vrcp.pop %v1005
  %v1010 = vmul.f32 1.0, %v1009
  %v1011 = vrcp.pop %v1006
  %v1012 = vmul.f32 1.0, %v1011
  %v1013 = vtanh.pop %v994
  %v1014 = vmul.f32 %v1010, %v811
  %v1015 = vmul.f32 %v1008, %v1013
  %v1016 = vadd.f32 %v1014, %v1015
  %v1017 = vtanh.pop %v1016
  %v1018 = vmul.f32 %v1012, %v1017
  %s1019 = scalar_lea.vmem %s0, 120
  %v1020 = vld [vmem:[%s1019] sm:$0xff]
  %v1021 = vld [vmem:[%s1019 + $0x8] sm:$0xff]
  %v1022 = vld [vmem:[%s1019 + $0x10] sm:$0x7]
  %v1024 = vsel %vm73, %v1022, 0
  %1026 = vmatprep.subr.mxu0 0.0
  %1027 = vmatpush1.msra.mxu0 %v1020
  %1028 = vmatprep.subr.mxu0 0.0
  %1029 = vmatpush1.msra.mxu0 %v1021
  %1030 = vmatprep.subr.mxu0 0.0
  %1031 = vmatpush1.msra.mxu0 %v1024
  %1032 = vmatprep.subr.mxu0 0.0
  %1033 = vmatpush1.msra.mxu0 0.0
  %1034 = vmatprep.subr.mxu0 0.0
  %1035 = vmatpush1.msra.mxu0 0.0
  %1036 = vmatprep.subr.mxu0 0.0
  %1037 = vmatpush1.msra.mxu0 0.0
  %1038 = vmatprep.subr.mxu0 0.0
  %1039 = vmatpush1.msra.mxu0 0.0
  %1040 = vmatprep.subr.mxu0 0.0
  %1041 = vmatpush1.msra.mxu0 0.0
  %1042 = vmatprep.subr.mxu0 0.0
  %1043 = vmatpush1.msra.mxu0 0.0
  %1044 = vmatprep.subr.mxu0 0.0
  %1045 = vmatpush1.msra.mxu0 0.0
  %1046 = vmatprep.subr.mxu0 0.0
  %1047 = vmatpush1.msra.mxu0 0.0
  %1048 = vmatprep.subr.mxu0 0.0
  %1049 = vmatpush1.msra.mxu0 0.0
  %1050 = vmatprep.subr.mxu0 0.0
  %1051 = vmatpush1.msra.mxu0 0.0
  %1052 = vmatprep.subr.mxu0 0.0
  %1053 = vmatpush1.msra.mxu0 0.0
  %1054 = vmatprep.subr.mxu0 0.0
  %1055 = vmatpush1.msra.mxu0 0.0
  %1056 = vmatprep.subr.mxu0 0.0
  %1057 = vmatpush1.msra.mxu0 0.0
  %1058 = vmatprep.subr.mxu0 0.0
  %1059 = vmatpush1.msra.mxu0 0.0
  %1060 = vmatprep.subr.mxu0 0.0
  %1061 = vmatpush1.msra.mxu0 0.0
  %1062 = vmatprep.subr.mxu0 0.0
  %1063 = vmatpush1.msra.mxu0 0.0
  %1064 = vmatprep.subr.mxu0 0.0
  %1065 = vmatpush1.msra.mxu0 0.0
  %1066 = vmatprep.subr.mxu0 0.0
  %1067 = vmatpush1.msra.mxu0 0.0
  %1068 = vmatprep.subr.mxu0 0.0
  %1069 = vmatpush1.msra.mxu0 0.0
  %1070 = vmatprep.subr.mxu0 0.0
  %1071 = vmatpush1.msra.mxu0 0.0
  %1072 = vmatprep.subr.mxu0 0.0
  %1073 = vmatpush1.msra.mxu0 0.0
  %1074 = vmatprep.subr.mxu0 0.0
  %1075 = vmatpush1.msra.mxu0 0.0
  %1076 = vmatprep.subr.mxu0 0.0
  %1077 = vmatpush1.msra.mxu0 0.0
  %1078 = vmatprep.subr.mxu0 0.0
  %1079 = vmatpush1.msra.mxu0 0.0
  %1080 = vmatprep.subr.mxu0 0.0
  %1081 = vmatpush1.msra.mxu0 0.0
  %1082 = vmatprep.subr.mxu0 0.0
  %1083 = vmatpush1.msra.mxu0 0.0
  %1084 = vmatprep.subr.mxu0 0.0
  %1085 = vmatpush1.msra.mxu0 0.0
  %1086 = vmatprep.subr.mxu0 0.0
  %1087 = vmatpush1.msra.mxu0 0.0
  %1088 = vmatprep.subr.mxu0 0.0
  %1089 = vmatpush1.msra.mxu0 0.0
  %1090 = vmatprep.mubr.f32.mxu0 0.0
  %1091 = vmatmul.mubr.f32.gmra.mrb[0].mxu0 %v62
  %v1092 = vpop.f32.mrb[0].mxu0
  %v1093 = vadd.f32 %v43, %v1092
  %v1094 = vpop.f32.mrb[0].mxu0
  %1095 = vmatprep.mubr.f32.mxu0 0.0
  %1096 = vmatmul.mubr.f32.gmra.mrb[0].mxu0 %v65
  %v1097 = vpop.f32.mrb[0].mxu0
  %v1098 = vadd.f32 %v48, %v1097
  %v1099 = vpop.f32.mrb[0].mxu0
  %1100 = vmatprep.mubr.f32.mxu0 0.0
  %1101 = vmatmul.mubr.f32.gmra.mrb[0].mxu0 %v68
  %v1102 = vpop.f32.mrb[0].mxu0
  %v1103 = vadd.f32 %v53, %v1102
  %v1104 = vpop.f32.mrb[0].mxu0
  %1105 = vmatprep.mubr.f32.mxu0 0.0
  %1106 = vmatmul.mubr.f32.gmra.mrb[0].mxu0 %v71
  %v1107 = vpop.f32.mrb[0].mxu0
  %v1108 = vadd.f32 %v58, %v1107
  %v1109 = vpop.f32.mrb[0].mxu0
  %1110 = vdwg.mxu0
  %1111 = vmatprep.subr.mxu0 0.0
  %1112 = vmatpush1.msra.mxu0 %v1018
  %1113 = vmatprep.subr.mxu0 0.0
  %1114 = vmatpush1.msra.mxu0 0.0
  %1115 = vmatprep.subr.mxu0 0.0
  %1116 = vmatpush1.msra.mxu0 0.0
  %1117 = vmatprep.subr.mxu0 0.0
  %1118 = vmatpush1.msra.mxu0 0.0
  %1119 = vmatprep.subr.mxu0 0.0
  %1120 = vmatpush1.msra.mxu0 0.0
  %1121 = vmatprep.subr.mxu0 0.0
  %1122 = vmatpush1.msra.mxu0 0.0
  %1123 = vmatprep.subr.mxu0 0.0
  %1124 = vmatpush1.msra.mxu0 0.0
  %1125 = vmatprep.subr.mxu0 0.0
  %1126 = vmatpush1.msra.mxu0 0.0
  %1127 = vmatprep.subr.mxu0 0.0
  %1128 = vmatpush1.msra.mxu0 0.0
  %1129 = vmatprep.subr.mxu0 0.0
  %1130 = vmatpush1.msra.mxu0 0.0
  %1131 = vmatprep.subr.mxu0 0.0
  %1132 = vmatpush1.msra.mxu0 0.0
  %1133 = vmatprep.subr.mxu0 0.0
  %1134 = vmatpush1.msra.mxu0 0.0
  %1135 = vmatprep.subr.mxu0 0.0
  %1136 = vmatpush1.msra.mxu0 0.0
  %1137 = vmatprep.subr.mxu0 0.0
  %1138 = vmatpush1.msra.mxu0 0.0
  %1139 = vmatprep.subr.mxu0 0.0
  %1140 = vmatpush1.msra.mxu0 0.0
  %1141 = vmatprep.subr.mxu0 0.0
  %1142 = vmatpush1.msra.mxu0 0.0
  %1143 = vmatprep.subr.mxu0 0.0
  %1144 = vmatpush1.msra.mxu0 0.0
  %1145 = vmatprep.subr.mxu0 0.0
  %1146 = vmatpush1.msra.mxu0 0.0
  %1147 = vmatprep.subr.mxu0 0.0
  %1148 = vmatpush1.msra.mxu0 0.0
  %1149 = vmatprep.subr.mxu0 0.0
  %1150 = vmatpush1.msra.mxu0 0.0
  %1151 = vmatprep.subr.mxu0 0.0
  %1152 = vmatpush1.msra.mxu0 0.0
  %1153 = vmatprep.subr.mxu0 0.0
  %1154 = vmatpush1.msra.mxu0 0.0
  %1155 = vmatprep.subr.mxu0 0.0
  %1156 = vmatpush1.msra.mxu0 0.0
  %1157 = vmatprep.subr.mxu0 0.0
  %1158 = vmatpush1.msra.mxu0 0.0
  %1159 = vmatprep.subr.mxu0 0.0
  %1160 = vmatpush1.msra.mxu0 0.0
  %1161 = vmatprep.subr.mxu0 0.0
  %1162 = vmatpush1.msra.mxu0 0.0
  %1163 = vmatprep.subr.mxu0 0.0
  %1164 = vmatpush1.msra.mxu0 0.0
  %1165 = vmatprep.subr.mxu0 0.0
  %1166 = vmatpush1.msra.mxu0 0.0
  %1167 = vmatprep.subr.mxu0 0.0
  %1168 = vmatpush1.msra.mxu0 0.0
  %1169 = vmatprep.subr.mxu0 0.0
  %1170 = vmatpush1.msra.mxu0 0.0
  %1171 = vmatprep.subr.mxu0 0.0
  %1172 = vmatpush1.msra.mxu0 0.0
  %1173 = vmatprep.subr.mxu0 0.0
  %1174 = vmatpush1.msra.mxu0 0.0
  %1175 = vmatprep.mubr.f32.mxu0 0.0
  %1176 = vmatmul.mubr.f32.gmra.mrb[0].mxu0 %v280
  %v1177 = vpop.f32.mrb[0].mxu0
  %v1178 = vadd.f32 0.0, %v1177
  %v1179 = vpop.f32.mrb[0].mxu0
  %1180 = vmatprep.mubr.f32.mxu0 0.0
  %1181 = vmatmul.mubr.f32.gmra.mrb[0].mxu0 %v283
  %v1182 = vpop.f32.mrb[0].mxu0
  %v1183 = vadd.f32 0.0, %v1182
  %v1184 = vpop.f32.mrb[0].mxu0
  %1185 = vmatprep.mubr.f32.mxu0 0.0
  %1186 = vmatmul.mubr.f32.gmra.mrb[0].mxu0 %v286
  %v1187 = vpop.f32.mrb[0].mxu0
  %v1188 = vadd.f32 0.0, %v1187
  %v1189 = vpop.f32.mrb[0].mxu0
  %1190 = vmatprep.mubr.f32.mxu0 0.0
  %1191 = vmatmul.mubr.f32.gmra.mrb[0].mxu0 %v289
  %v1192 = vpop.f32.mrb[0].mxu0
  %v1193 = vadd.f32 0.0, %v1192
  %v1194 = vpop.f32.mrb[0].mxu0
  %1195 = vdwg.mxu0
  %v1196 = vadd.f32 %v1093, %v1178
  %v1197 = vadd.f32 %v1098, %v1183
  %v1198 = vadd.f32 %v1103, %v1188
  %v1199 = vadd.f32 %v1108, %v1193
  %v1200 = vxor.u32 %v1196, 2147483648
  %v1201 = vxor.u32 %v1197, 2147483648
  %v1202 = vxor.u32 %v1198, 2147483648
  %v1203 = vmul.f32 %v1200, 1.442695
  %v1204 = vpow.pop %v1203
  %v1205 = vmul.f32 %v1201, 1.442695
  %v1206 = vpow.pop %v1205
  %v1207 = vmul.f32 %v1202, 1.442695
  %v1208 = vpow.pop %v1207
  %v1209 = vadd.f32 %v1204, 1.0
  %v1210 = vadd.f32 %v1206, 1.0
  %v1211 = vadd.f32 %v1208, 1.0
  %v1212 = vrcp.pop %v1209
  %v1213 = vmul.f32 1.0, %v1212
  %v1214 = vrcp.pop %v1210
  %v1215 = vmul.f32 1.0, %v1214
  %v1216 = vrcp.pop %v1211
  %v1217 = vmul.f32 1.0, %v1216
  %v1218 = vtanh.pop %v1199
  %v1219 = vmul.f32 %v1215, %v1016
  %v1220 = vmul.f32 %v1213, %v1218
  %v1221 = vadd.f32 %v1219, %v1220
  %v1222 = vtanh.pop %v1221
  %v1223 = vmul.f32 %v1217, %v1222
  %s1224 = scalar_lea.vmem %s0, 144
  %v1225 = vld [vmem:[%s1224] sm:$0xff]
  %v1226 = vld [vmem:[%s1224 + $0x8] sm:$0xff]
  %v1227 = vld [vmem:[%s1224 + $0x10] sm:$0x7]
  %v1229 = vsel %vm73, %v1227, 0
  %1231 = vmatprep.subr.mxu0 0.0
  %1232 = vmatpush1.msra.mxu0 %v1225
  %1233 = vmatprep.subr.mxu0 0.0
  %1234 = vmatpush1.msra.mxu0 %v1226
  %1235 = vmatprep.subr.mxu0 0.0
  %1236 = vmatpush1.msra.mxu0 %v1229
  %1237 = vmatprep.subr.mxu0 0.0
  %1238 = vmatpush1.msra.mxu0 0.0
  %1239 = vmatprep.subr.mxu0 0.0
  %1240 = vmatpush1.msra.mxu0 0.0
  %1241 = vmatprep.subr.mxu0 0.0
  %1242 = vmatpush1.msra.mxu0 0.0
  %1243 = vmatprep.subr.mxu0 0.0
  %1244 = vmatpush1.msra.mxu0 0.0
  %1245 = vmatprep.subr.mxu0 0.0
  %1246 = vmatpush1.msra.mxu0 0.0
  %1247 = vmatprep.subr.mxu0 0.0
  %1248 = vmatpush1.msra.mxu0 0.0
  %1249 = vmatprep.subr.mxu0 0.0
  %1250 = vmatpush1.msra.mxu0 0.0
  %1251 = vmatprep.subr.mxu0 0.0
  %1252 = vmatpush1.msra.mxu0 0.0
  %1253 = vmatprep.subr.mxu0 0.0
  %1254 = vmatpush1.msra.mxu0 0.0
  %1255 = vmatprep.subr.mxu0 0.0
  %1256 = vmatpush1.msra.mxu0 0.0
  %1257 = vmatprep.subr.mxu0 0.0
  %1258 = vmatpush1.msra.mxu0 0.0
  %1259 = vmatprep.subr.mxu0 0.0
  %1260 = vmatpush1.msra.mxu0 0.0
  %1261 = vmatprep.subr.mxu0 0.0
  %1262 = vmatpush1.msra.mxu0 0.0
  %1263 = vmatprep.subr.mxu0 0.0
  %1264 = vmatpush1.msra.mxu0 0.0
  %1265 = vmatprep.subr.mxu0 0.0
  %1266 = vmatpush1.msra.mxu0 0.0
  %1267 = vmatprep.subr.mxu0 0.0
  %1268 = vmatpush1.msra.mxu0 0.0
  %1269 = vmatprep.subr.mxu0 0.0
  %1270 = vmatpush1.msra.mxu0 0.0
  %1271 = vmatprep.subr.mxu0 0.0
  %1272 = vmatpush1.msra.mxu0 0.0
  %1273 = vmatprep.subr.mxu0 0.0
  %1274 = vmatpush1.msra.mxu0 0.0
  %1275 = vmatprep.subr.mxu0 0.0
  %1276 = vmatpush1.msra.mxu0 0.0
  %1277 = vmatprep.subr.mxu0 0.0
  %1278 = vmatpush1.msra.mxu0 0.0
  %1279 = vmatprep.subr.mxu0 0.0
  %1280 = vmatpush1.msra.mxu0 0.0
  %1281 = vmatprep.subr.mxu0 0.0
  %1282 = vmatpush1.msra.mxu0 0.0
  %1283 = vmatprep.subr.mxu0 0.0
  %1284 = vmatpush1.msra.mxu0 0.0
  %1285 = vmatprep.subr.mxu0 0.0
  %1286 = vmatpush1.msra.mxu0 0.0
  %1287 = vmatprep.subr.mxu0 0.0
  %1288 = vmatpush1.msra.mxu0 0.0
  %1289 = vmatprep.subr.mxu0 0.0
  %1290 = vmatpush1.msra.mxu0 0.0
  %1291 = vmatprep.subr.mxu0 0.0
  %1292 = vmatpush1.msra.mxu0 0.0
  %1293 = vmatprep.subr.mxu0 0.0
  %1294 = vmatpush1.msra.mxu0 0.0
  %1295 = vmatprep.mubr.f32.mxu0 0.0
  %1296 = vmatmul.mubr.f32.gmra.mrb[0].mxu0 %v62
  %v1297 = vpop.f32.mrb[0].mxu0
  %v1298 = vadd.f32 %v43, %v1297
  %v1299 = vpop.f32.mrb[0].mxu0
  %1300 = vmatprep.mubr.f32.mxu0 0.0
  %1301 = vmatmul.mubr.f32.gmra.mrb[0].mxu0 %v65
  %v1302 = vpop.f32.mrb[0].mxu0
  %v1303 = vadd.f32 %v48, %v1302
  %v1304 = vpop.f32.mrb[0].mxu0
  %1305 = vmatprep.mubr.f32.mxu0 0.0
  %1306 = vmatmul.mubr.f32.gmra.mrb[0].mxu0 %v68
  %v1307 = vpop.f32.mrb[0].mxu0
  %v1308 = vadd.f32 %v53, %v1307
  %v1309 = vpop.f32.mrb[0].mxu0
  %1310 = vmatprep.mubr.f32.mxu0 0.0
  %1311 = vmatmul.mubr.f32.gmra.mrb[0].mxu0 %v71
  %v1312 = vpop.f32.mrb[0].mxu0
  %v1313 = vadd.f32 %v58, %v1312
  %v1314 = vpop.f32.mrb[0].mxu0
  %1315 = vdwg.mxu0
  %1316 = vmatprep.subr.mxu0 0.0
  %1317 = vmatpush1.msra.mxu0 %v1223
  %1318 = vmatprep.subr.mxu0 0.0
  %1319 = vmatpush1.msra.mxu0 0.0
  %1320 = vmatprep.subr.mxu0 0.0
  %1321 = vmatpush1.msra.mxu0 0.0
  %1322 = vmatprep.subr.mxu0 0.0
  %1323 = vmatpush1.msra.mxu0 0.0
  %1324 = vmatprep.subr.mxu0 0.0
  %1325 = vmatpush1.msra.mxu0 0.0
  %1326 = vmatprep.subr.mxu0 0.0
  %1327 = vmatpush1.msra.mxu0 0.0
  %1328 = vmatprep.subr.mxu0 0.0
  %1329 = vmatpush1.msra.mxu0 0.0
  %1330 = vmatprep.subr.mxu0 0.0
  %1331 = vmatpush1.msra.mxu0 0.0
  %1332 = vmatprep.subr.mxu0 0.0
  %1333 = vmatpush1.msra.mxu0 0.0
  %1334 = vmatprep.subr.mxu0 0.0
  %1335 = vmatpush1.msra.mxu0 0.0
  %1336 = vmatprep.subr.mxu0 0.0
  %1337 = vmatpush1.msra.mxu0 0.0
  %1338 = vmatprep.subr.mxu0 0.0
  %1339 = vmatpush1.msra.mxu0 0.0
  %1340 = vmatprep.subr.mxu0 0.0
  %1341 = vmatpush1.msra.mxu0 0.0
  %1342 = vmatprep.subr.mxu0 0.0
  %1343 = vmatpush1.msra.mxu0 0.0
  %1344 = vmatprep.subr.mxu0 0.0
  %1345 = vmatpush1.msra.mxu0 0.0
  %1346 = vmatprep.subr.mxu0 0.0
  %1347 = vmatpush1.msra.mxu0 0.0
  %1348 = vmatprep.subr.mxu0 0.0
  %1349 = vmatpush1.msra.mxu0 0.0
  %1350 = vmatprep.subr.mxu0 0.0
  %1351 = vmatpush1.msra.mxu0 0.0
  %1352 = vmatprep.subr.mxu0 0.0
  %1353 = vmatpush1.msra.mxu0 0.0
  %1354 = vmatprep.subr.mxu0 0.0
  %1355 = vmatpush1.msra.mxu0 0.0
  %1356 = vmatprep.subr.mxu0 0.0
  %1357 = vmatpush1.msra.mxu0 0.0
  %1358 = vmatprep.subr.mxu0 0.0
  %1359 = vmatpush1.msra.mxu0 0.0
  %1360 = vmatprep.subr.mxu0 0.0
  %1361 = vmatpush1.msra.mxu0 0.0
  %1362 = vmatprep.subr.mxu0 0.0
  %1363 = vmatpush1.msra.mxu0 0.0
  %1364 = vmatprep.subr.mxu0 0.0
  %1365 = vmatpush1.msra.mxu0 0.0
  %1366 = vmatprep.subr.mxu0 0.0
  %1367 = vmatpush1.msra.mxu0 0.0
  %1368 = vmatprep.subr.mxu0 0.0
  %1369 = vmatpush1.msra.mxu0 0.0
  %1370 = vmatprep.subr.mxu0 0.0
  %1371 = vmatpush1.msra.mxu0 0.0
  %1372 = vmatprep.subr.mxu0 0.0
  %1373 = vmatpush1.msra.mxu0 0.0
  %1374 = vmatprep.subr.mxu0 0.0
  %1375 = vmatpush1.msra.mxu0 0.0
  %1376 = vmatprep.subr.mxu0 0.0
  %1377 = vmatpush1.msra.mxu0 0.0
  %1378 = vmatprep.subr.mxu0 0.0
  %1379 = vmatpush1.msra.mxu0 0.0
  %1380 = vmatprep.mubr.f32.mxu0 0.0
  %1381 = vmatmul.mubr.f32.gmra.mrb[0].mxu0 %v280
  %v1382 = vpop.f32.mrb[0].mxu0
  %v1383 = vadd.f32 0.0, %v1382
  %v1384 = vpop.f32.mrb[0].mxu0
  %1385 = vmatprep.mubr.f32.mxu0 0.0
  %1386 = vmatmul.mubr.f32.gmra.mrb[0].mxu0 %v283
  %v1387 = vpop.f32.mrb[0].mxu0
  %v1388 = vadd.f32 0.0, %v1387
  %v1389 = vpop.f32.mrb[0].mxu0
  %1390 = vmatprep.mubr.f32.mxu0 0.0
  %1391 = vmatmul.mubr.f32.gmra.mrb[0].mxu0 %v286
  %v1392 = vpop.f32.mrb[0].mxu0
  %v1393 = vadd.f32 0.0, %v1392
  %v1394 = vpop.f32.mrb[0].mxu0
  %1395 = vmatprep.mubr.f32.mxu0 0.0
  %1396 = vmatmul.mubr.f32.gmra.mrb[0].mxu0 %v289
  %v1397 = vpop.f32.mrb[0].mxu0
  %v1398 = vadd.f32 0.0, %v1397
  %v1399 = vpop.f32.mrb[0].mxu0
  %1400 = vdwg.mxu0
  %v1401 = vadd.f32 %v1298, %v1383
  %v1402 = vadd.f32 %v1303, %v1388
  %v1403 = vadd.f32 %v1308, %v1393
  %v1404 = vadd.f32 %v1313, %v1398
  %v1405 = vxor.u32 %v1401, 2147483648
  %v1406 = vxor.u32 %v1402, 2147483648
  %v1407 = vxor.u32 %v1403, 2147483648
  %v1408 = vmul.f32 %v1405, 1.442695
  %v1409 = vpow.pop %v1408
  %v1410 = vmul.f32 %v1406, 1.442695
  %v1411 = vpow.pop %v1410
  %v1412 = vmul.f32 %v1407, 1.442695
  %v1413 = vpow.pop %v1412
  %v1414 = vadd.f32 %v1409, 1.0
  %v1415 = vadd.f32 %v1411, 1.0
  %v1416 = vadd.f32 %v1413, 1.0
  %v1417 = vrcp.pop %v1414
  %v1418 = vmul.f32 1.0, %v1417
  %v1419 = vrcp.pop %v1415
  %v1420 = vmul.f32 1.0, %v1419
  %v1421 = vrcp.pop %v1416
  %v1422 = vmul.f32 1.0, %v1421
  %v1423 = vtanh.pop %v1404
  %v1424 = vmul.f32 %v1420, %v1221
  %v1425 = vmul.f32 %v1418, %v1423
  %v1426 = vadd.f32 %v1424, %v1425
  %v1427 = vtanh.pop %v1426
  %v1428 = vmul.f32 %v1422, %v1427
  %s1429 = scalar_lea.vmem %s0, 168
  %v1430 = vld [vmem:[%s1429] sm:$0xff]
  %v1431 = vld [vmem:[%s1429 + $0x8] sm:$0xff]
  %v1432 = vld [vmem:[%s1429 + $0x10] sm:$0x7]
  %v1434 = vsel %vm73, %v1432, 0
  %1436 = vmatprep.subr.mxu0 0.0
  %1437 = vmatpush1.msra.mxu0 %v1430
  %1438 = vmatprep.subr.mxu0 0.0
  %1439 = vmatpush1.msra.mxu0 %v1431
  %1440 = vmatprep.subr.mxu0 0.0
  %1441 = vmatpush1.msra.mxu0 %v1434
  %1442 = vmatprep.subr.mxu0 0.0
  %1443 = vmatpush1.msra.mxu0 0.0
  %1444 = vmatprep.subr.mxu0 0.0
  %1445 = vmatpush1.msra.mxu0 0.0
  %1446 = vmatprep.subr.mxu0 0.0
  %1447 = vmatpush1.msra.mxu0 0.0
  %1448 = vmatprep.subr.mxu0 0.0
  %1449 = vmatpush1.msra.mxu0 0.0
  %1450 = vmatprep.subr.mxu0 0.0
  %1451 = vmatpush1.msra.mxu0 0.0
  %1452 = vmatprep.subr.mxu0 0.0
  %1453 = vmatpush1.msra.mxu0 0.0
  %1454 = vmatprep.subr.mxu0 0.0
  %1455 = vmatpush1.msra.mxu0 0.0
  %1456 = vmatprep.subr.mxu0 0.0
  %1457 = vmatpush1.msra.mxu0 0.0
  %1458 = vmatprep.subr.mxu0 0.0
  %1459 = vmatpush1.msra.mxu0 0.0
  %1460 = vmatprep.subr.mxu0 0.0
  %1461 = vmatpush1.msra.mxu0 0.0
  %1462 = vmatprep.subr.mxu0 0.0
  %1463 = vmatpush1.msra.mxu0 0.0
  %1464 = vmatprep.subr.mxu0 0.0
  %1465 = vmatpush1.msra.mxu0 0.0
  %1466 = vmatprep.subr.mxu0 0.0
  %1467 = vmatpush1.msra.mxu0 0.0
  %1468 = vmatprep.subr.mxu0 0.0
  %1469 = vmatpush1.msra.mxu0 0.0
  %1470 = vmatprep.subr.mxu0 0.0
  %1471 = vmatpush1.msra.mxu0 0.0
  %1472 = vmatprep.subr.mxu0 0.0
  %1473 = vmatpush1.msra.mxu0 0.0
  %1474 = vmatprep.subr.mxu0 0.0
  %1475 = vmatpush1.msra.mxu0 0.0
  %1476 = vmatprep.subr.mxu0 0.0
  %1477 = vmatpush1.msra.mxu0 0.0
  %1478 = vmatprep.subr.mxu0 0.0
  %1479 = vmatpush1.msra.mxu0 0.0
  %1480 = vmatprep.subr.mxu0 0.0
  %1481 = vmatpush1.msra.mxu0 0.0
  %1482 = vmatprep.subr.mxu0 0.0
  %1483 = vmatpush1.msra.mxu0 0.0
  %1484 = vmatprep.subr.mxu0 0.0
  %1485 = vmatpush1.msra.mxu0 0.0
  %1486 = vmatprep.subr.mxu0 0.0
  %1487 = vmatpush1.msra.mxu0 0.0
  %1488 = vmatprep.subr.mxu0 0.0
  %1489 = vmatpush1.msra.mxu0 0.0
  %1490 = vmatprep.subr.mxu0 0.0
  %1491 = vmatpush1.msra.mxu0 0.0
  %1492 = vmatprep.subr.mxu0 0.0
  %1493 = vmatpush1.msra.mxu0 0.0
  %1494 = vmatprep.subr.mxu0 0.0
  %1495 = vmatpush1.msra.mxu0 0.0
  %1496 = vmatprep.subr.mxu0 0.0
  %1497 = vmatpush1.msra.mxu0 0.0
  %1498 = vmatprep.subr.mxu0 0.0
  %1499 = vmatpush1.msra.mxu0 0.0
  %1500 = vmatprep.mubr.f32.mxu0 0.0
  %1501 = vmatmul.mubr.f32.gmra.mrb[0].mxu0 %v62
  %v1502 = vpop.f32.mrb[0].mxu0
  %v1503 = vadd.f32 %v43, %v1502
  %v1504 = vpop.f32.mrb[0].mxu0
  %1505 = vmatprep.mubr.f32.mxu0 0.0
  %1506 = vmatmul.mubr.f32.gmra.mrb[0].mxu0 %v65
  %v1507 = vpop.f32.mrb[0].mxu0
  %v1508 = vadd.f32 %v48, %v1507
  %v1509 = vpop.f32.mrb[0].mxu0
  %1510 = vmatprep.mubr.f32.mxu0 0.0
  %1511 = vmatmul.mubr.f32.gmra.mrb[0].mxu0 %v68
  %v1512 = vpop.f32.mrb[0].mxu0
  %v1513 = vadd.f32 %v53, %v1512
  %v1514 = vpop.f32.mrb[0].mxu0
  %1515 = vmatprep.mubr.f32.mxu0 0.0
  %1516 = vmatmul.mubr.f32.gmra.mrb[0].mxu0 %v71
  %v1517 = vpop.f32.mrb[0].mxu0
  %v1518 = vadd.f32 %v58, %v1517
  %v1519 = vpop.f32.mrb[0].mxu0
  %1520 = vdwg.mxu0
  %1521 = vmatprep.subr.mxu0 0.0
  %1522 = vmatpush1.msra.mxu0 %v1428
  %1523 = vmatprep.subr.mxu0 0.0
  %1524 = vmatpush1.msra.mxu0 0.0
  %1525 = vmatprep.subr.mxu0 0.0
  %1526 = vmatpush1.msra.mxu0 0.0
  %1527 = vmatprep.subr.mxu0 0.0
  %1528 = vmatpush1.msra.mxu0 0.0
  %1529 = vmatprep.subr.mxu0 0.0
  %1530 = vmatpush1.msra.mxu0 0.0
  %1531 = vmatprep.subr.mxu0 0.0
  %1532 = vmatpush1.msra.mxu0 0.0
  %1533 = vmatprep.subr.mxu0 0.0
  %1534 = vmatpush1.msra.mxu0 0.0
  %1535 = vmatprep.subr.mxu0 0.0
  %1536 = vmatpush1.msra.mxu0 0.0
  %1537 = vmatprep.subr.mxu0 0.0
  %1538 = vmatpush1.msra.mxu0 0.0
  %1539 = vmatprep.subr.mxu0 0.0
  %1540 = vmatpush1.msra.mxu0 0.0
  %1541 = vmatprep.subr.mxu0 0.0
  %1542 = vmatpush1.msra.mxu0 0.0
  %1543 = vmatprep.subr.mxu0 0.0
  %1544 = vmatpush1.msra.mxu0 0.0
  %1545 = vmatprep.subr.mxu0 0.0
  %1546 = vmatpush1.msra.mxu0 0.0
  %1547 = vmatprep.subr.mxu0 0.0
  %1548 = vmatpush1.msra.mxu0 0.0
  %1549 = vmatprep.subr.mxu0 0.0
  %1550 = vmatpush1.msra.mxu0 0.0
  %1551 = vmatprep.subr.mxu0 0.0
  %1552 = vmatpush1.msra.mxu0 0.0
  %1553 = vmatprep.subr.mxu0 0.0
  %1554 = vmatpush1.msra.mxu0 0.0
  %1555 = vmatprep.subr.mxu0 0.0
  %1556 = vmatpush1.msra.mxu0 0.0
  %1557 = vmatprep.subr.mxu0 0.0
  %1558 = vmatpush1.msra.mxu0 0.0
  %1559 = vmatprep.subr.mxu0 0.0
  %1560 = vmatpush1.msra.mxu0 0.0
  %1561 = vmatprep.subr.mxu0 0.0
  %1562 = vmatpush1.msra.mxu0 0.0
  %1563 = vmatprep.subr.mxu0 0.0
  %1564 = vmatpush1.msra.mxu0 0.0
  %1565 = vmatprep.subr.mxu0 0.0
  %1566 = vmatpush1.msra.mxu0 0.0
  %1567 = vmatprep.subr.mxu0 0.0
  %1568 = vmatpush1.msra.mxu0 0.0
  %1569 = vmatprep.subr.mxu0 0.0
  %1570 = vmatpush1.msra.mxu0 0.0
  %1571 = vmatprep.subr.mxu0 0.0
  %1572 = vmatpush1.msra.mxu0 0.0
  %1573 = vmatprep.subr.mxu0 0.0
  %1574 = vmatpush1.msra.mxu0 0.0
  %1575 = vmatprep.subr.mxu0 0.0
  %1576 = vmatpush1.msra.mxu0 0.0
  %1577 = vmatprep.subr.mxu0 0.0
  %1578 = vmatpush1.msra.mxu0 0.0
  %1579 = vmatprep.subr.mxu0 0.0
  %1580 = vmatpush1.msra.mxu0 0.0
  %1581 = vmatprep.subr.mxu0 0.0
  %1582 = vmatpush1.msra.mxu0 0.0
  %1583 = vmatprep.subr.mxu0 0.0
  %1584 = vmatpush1.msra.mxu0 0.0
  %1585 = vmatprep.mubr.f32.mxu0 0.0
  %1586 = vmatmul.mubr.f32.gmra.mrb[0].mxu0 %v280
  %v1587 = vpop.f32.mrb[0].mxu0
  %v1588 = vadd.f32 0.0, %v1587
  %v1589 = vpop.f32.mrb[0].mxu0
  %1590 = vmatprep.mubr.f32.mxu0 0.0
  %1591 = vmatmul.mubr.f32.gmra.mrb[0].mxu0 %v283
  %v1592 = vpop.f32.mrb[0].mxu0
  %v1593 = vadd.f32 0.0, %v1592
  %v1594 = vpop.f32.mrb[0].mxu0
  %1595 = vmatprep.mubr.f32.mxu0 0.0
  %1596 = vmatmul.mubr.f32.gmra.mrb[0].mxu0 %v286
  %v1597 = vpop.f32.mrb[0].mxu0
  %v1598 = vadd.f32 0.0, %v1597
  %v1599 = vpop.f32.mrb[0].mxu0
  %1600 = vmatprep.mubr.f32.mxu0 0.0
  %1601 = vmatmul.mubr.f32.gmra.mrb[0].mxu0 %v289
  %v1602 = vpop.f32.mrb[0].mxu0
  %v1603 = vadd.f32 0.0, %v1602
  %v1604 = vpop.f32.mrb[0].mxu0
  %1605 = vdwg.mxu0
  %v1606 = vadd.f32 %v1503, %v1588
  %v1607 = vadd.f32 %v1508, %v1593
  %v1608 = vadd.f32 %v1513, %v1598
  %v1609 = vadd.f32 %v1518, %v1603
  %v1610 = vxor.u32 %v1606, 2147483648
  %v1611 = vxor.u32 %v1607, 2147483648
  %v1612 = vxor.u32 %v1608, 2147483648
  %v1613 = vmul.f32 %v1610, 1.442695
  %v1614 = vpow.pop %v1613
  %v1615 = vmul.f32 %v1611, 1.442695
  %v1616 = vpow.pop %v1615
  %v1617 = vmul.f32 %v1612, 1.442695
  %v1618 = vpow.pop %v1617
  %v1619 = vadd.f32 %v1614, 1.0
  %v1620 = vadd.f32 %v1616, 1.0
  %v1621 = vadd.f32 %v1618, 1.0
  %v1622 = vrcp.pop %v1619
  %v1623 = vmul.f32 1.0, %v1622
  %v1624 = vrcp.pop %v1620
  %v1625 = vmul.f32 1.0, %v1624
  %v1626 = vrcp.pop %v1621
  %v1627 = vmul.f32 1.0, %v1626
  %v1628 = vtanh.pop %v1609
  %v1629 = vmul.f32 %v1625, %v1426
  %v1630 = vmul.f32 %v1623, %v1628
  %v1631 = vadd.f32 %v1629, %v1630
  %v1632 = vtanh.pop %v1631
  %v1633 = vmul.f32 %v1627, %v1632
  %v1634 = vld [vmem:[%s4] sm:$0xff]
  %1636 = vset.pattern.permute.xlu0 0
  %1637 = vperm.xlu0 %1636, %v1634
  %v1638 = vpop.permute.xlu0 %1637
  %v1640 = vmul.f32 %v1633, %v1638
  %v1641 = vrot.slane %v1640, 4
  %v1642 = vadd.f32 %v1640, %v1641
  %v1643 = vrot.slane %v1642, 2
  %v1644 = vadd.f32 %v1642, %v1643
  %v1645 = vrot.slane %v1644, 1
  %v1646 = vadd.f32 %v1644, %v1645
  %v1647 = vld [vmem:[#allocation2] sm:$0x1]
  %1649 = vset.pattern.permute.xlu0 0
  %1650 = vperm.xlu0 %1649, %v1647
  %v1651 = vpop.permute.xlu0 %1650
  %v1653 = vlaneseq
  %v1654 = vshrl.u32 %v1653, 7
  %v1655 = vsub.s32 0, %v1654
  %v1656 = vrot.slane %v1651, %v1655
  %v1657 = vadd.f32 %v1646, %v1656
  %v1658 = vxor.u32 %v1657, 2147483648
  %v1659 = vmul.f32 %v1658, 1.442695
  %v1660 = vpow.pop %v1659
  %v1661 = vadd.f32 %v1660, 1.0
  %v1662 = vrcp.pop %v1661
  %v1663 = vmul.f32 1.0, %v1662
  %1664 = vst [vmem:[%s6] sm:$0x1] %v1663
  // Predicated region
  $region26: #{lstm_model_forward.1} parent=0 // pred_check
    _
  $region27: #{lstm_model_forward.1} parent=0 // pred_check_branch
    %1666 = sbr.rel (0) target = $region29
  $region28: #{lstm_model_forward.1} parent=0 // pred_region
    _
  $region29: #{lstm_model_forward.1} parent=0 // pred_fallthru
    _
  // Predicated region
  $region30: #{lstm_model_forward.1} parent=0 // pred_check
    _
  $region31: #{lstm_model_forward.1} parent=0 // pred_check_branch
    %1668 = sbr.rel (0) target = $region33
  $region32: #{lstm_model_forward.1} parent=0 // pred_region
    _
  $region33: #{lstm_model_forward.1} parent=0 // pred_fallthru
    _

</llo_original>
